<compile_context>
chip_gen: v7x
topology: tpu7x:2x2x1
jax: 0.10.0
libtpu: 0.0.40
codegen_flags: <defaults>
</compile_context>

<pallas_src>
import functools

import numpy as np

import jax
import jax.numpy as jnp
from jax.experimental import pallas as pl
from jax.experimental.pallas import tpu as pltpu


# ----------------------------- configuration -------------------------------
B = 2          # batch
T = 4          # episode length
C = 4          # env channels
H = W = 8      # spatial
OC = 16        # conv output channels
E = 32         # environment representation size
M = 32         # LSTM hidden (mental state) size
GOAL_NUM = 4
GOAL_DIM = GOAL_NUM + 1
ACTION_DIM = 5

KRAW = C * 9           # 36  : im2col patch width (c-major, 3x3 position innermost)
OUT_PACK = 128         # lane-dense packed output width
SUB = 8                # sublane granularity: per-step row blocks are padded to this

GOALS_OFF = M                          # [0:M)                mental state
GPROB_OFF = GOALS_OFF + GOAL_DIM       # [M:M+5)              goal logits
ACTS_OFF = GPROB_OFF + GOAL_DIM        # [M+5:M+10)           goal log-probs
APROB_OFF = ACTS_OFF + ACTION_DIM      # ...                  action logits / log-probs
OUT_USED = APROB_OFF + ACTION_DIM      # 52 real lanes; rest zero

_VMEM_SPEC = pl.BlockSpec(memory_space=pltpu.MemorySpace.VMEM)


# ----------------------------- fused kernel --------------------------------
def tomnet_fused_kernel(patches_ref, pool_ref, convw_ref, convb_ref,
                        fcw_ref, fcb_ref, wih_ref, whh_ref, blstm_ref,
                        headw_ref, headb_ref, out_ref, *, n_steps, rows_per_step):
    f32 = jnp.float32
    n_rows = n_steps * rows_per_step

    # ---- environment net --------------------------------------------------
    # im2col conv as ONE MXU matmul over every pixel of every real frame.
    conv = jnp.dot(patches_ref[...], convw_ref[...], preferred_element_type=f32)
    conv = jnp.maximum(conv + convb_ref[...], 0.0)                 # (N*HW, OC), ReLU

    # Global average pool as an MXU matmul with a host-precomputed block-averaging
    # matrix.  The matrix also scatters each step's B real frames into the first B
    # rows of an 8-row (sublane-aligned) block; pad rows pool to zero.
    pooled = jnp.dot(pool_ref[...], conv, preferred_element_type=f32)   # (T*8, OC)

    rep = jnp.maximum(
        jnp.dot(pooled, fcw_ref[...], preferred_element_type=f32) + fcb_ref[...],
        0.0)                                                             # (T*8, E), ReLU

    # ---- mental net: LSTM, time loop fully unrolled in-kernel -------------
    # Input-to-hidden contribution for every step in one matmul.
    xg = jnp.dot(rep, wih_ref[...], preferred_element_type=f32) + blstm_ref[...]  # (T*8, 4M)
    w_hh = whh_ref[...]                                                  # resident weights
    h = jnp.zeros((rows_per_step, M), f32)   # reinitialize_mental=True -> zero hidden
    c = jnp.zeros((rows_per_step, M), f32)
    h_steps = []                             # keep per-step h in registers (no scratch)
    for step in range(n_steps):              # static unroll (T is tiny, no grid overhead)
        r0 = step * rows_per_step            # sublane-tile aligned slice start
        gates = xg[r0:r0 + rows_per_step, :] + jnp.dot(h, w_hh,
                                                       preferred_element_type=f32)
        i = jax.nn.sigmoid(gates[:, 0 * M:1 * M])
        f = jax.nn.sigmoid(gates[:, 1 * M:2 * M])
        g = jnp.tanh(gates[:, 2 * M:3 * M])
        o = jax.nn.sigmoid(gates[:, 3 * M:4 * M])
        c = f * c + i * g
        h = o * jnp.tanh(c)
        h_steps.append(h)
    mental = jnp.concatenate(h_steps, axis=0)                            # (T*8, M)

    # ---- heads: one (M,128) matmul lane-places mental + both logit groups --
    packed = jnp.dot(mental, headw_ref[...], preferred_element_type=f32) + headb_ref[...]
    g_log = packed[:, GOALS_OFF:GPROB_OFF]                               # (rows, 5)
    a_log = packed[:, ACTS_OFF:APROB_OFF]                                # (rows, 5)

    def log_softmax(z):
        zmax = jnp.max(z, axis=-1, keepdims=True)
        return z - (zmax + jnp.log(jnp.sum(jnp.exp(z - zmax), axis=-1, keepdims=True)))

    # Assemble the full 128-lane row in registers and issue ONE unmasked dense store.
    out_ref[...] = jnp.concatenate(
        [packed[:, 0:GPROB_OFF],                       # mental + goal logits (from MXU)
         log_softmax(g_log),                           # goal log-probs
         a_log,                                        # action logits
         log_softmax(a_log),                           # action log-probs
         jnp.zeros((n_rows, OUT_PACK - OUT_USED), f32)],  # explicit zero tail
        axis=-1)


def run_tomnet_fused(patches, pool, conv_w, conv_b, fc_w, fc_b,
                     w_ih, w_hh, b_lstm, head_w, head_b, *, n_steps, rows_per_step):
    n_rows = n_steps * rows_per_step
    kern = functools.partial(tomnet_fused_kernel,
                             n_steps=n_steps, rows_per_step=rows_per_step)
    return pl.pallas_call(
        kern,
        out_shape=jax.ShapeDtypeStruct((n_rows, OUT_PACK), jnp.float32),
        in_specs=[_VMEM_SPEC] * 11,
        out_specs=_VMEM_SPEC,
    )(patches, pool, conv_w, conv_b, fc_w, fc_b, w_ih, w_hh, b_lstm, head_w, head_b)


# ----------------------------- host-side glue ------------------------------
def extract_patches_3x3(x):
    """x: (N, C, H, W) -> (N, H*W, C*9), 3x3 patches, padding=1 (SAME)."""
    n, c, h, w = x.shape
    xp = jnp.pad(x, ((0, 0), (0, 0), (1, 1), (1, 1)))
    cols = []
    for dh in range(3):
        for dw in range(3):
            cols.append(xp[:, :, dh:dh + h, dw:dw + w])      # (N, C, H, W)
    p = jnp.stack(cols, axis=2)                              # (N, C, 9, H, W)
    p = p.transpose(0, 3, 4, 1, 2)                           # (N, H, W, C, 9)
    return p.reshape(n, h * w, c * 9)


@jax.jit
def _tomnet_forward(environment, params):
    b, t, c, hh, ww = environment.shape
    n = b * t
    hw = hh * ww
    rps = ((b + SUB - 1) // SUB) * SUB           # per-step rows, sublane aligned
    n_rows = t * rps

    # (t, b) frame ordering so the in-kernel LSTM reads contiguous row blocks per step.
    frames = jnp.transpose(environment, (1, 0, 2, 3, 4)).reshape(n, c, hh, ww)
    # Raw 36-lane patches — no host-side lane padding (Mosaic pads in VMEM).
    patches = extract_patches_3x3(frames).reshape(n * hw, c * 9)

    # Pool/scatter matrix built with numpy at trace time -> compile-time constant.
    # Row (step*rps + bb) averages the hw pixels of real frame f = step*b + bb;
    # pad rows (bb >= b) are all-zero.
    pool_np = np.zeros((n_rows, n * hw), np.float32)
    for step in range(t):
        for bb in range(b):
            f = step * b + bb
            pool_np[step * rps + bb, f * hw:(f + 1) * hw] = 1.0 / hw
    pool = jnp.asarray(pool_np)

    packed = run_tomnet_fused(
        patches, pool, params["conv_w"], params["conv_b"],
        params["fc_w"], params["fc_b"],
        params["w_ih"], params["w_hh"], params["b_lstm"],
        params["head_w_full"], params["head_b_full"],
        n_steps=t, rows_per_step=rps)                        # (t*rps, 128)

    packed = packed.reshape(t, rps, OUT_PACK)[:, :b, :]      # drop pad rows
    packed = packed.transpose(1, 0, 2)                       # (b, t, 128)
    mental = packed[..., 0:M]
    goals = packed[..., GOALS_OFF:GOALS_OFF + GOAL_DIM]
    goals_prob = packed[..., GPROB_OFF:GPROB_OFF + GOAL_DIM]
    actions = packed[..., ACTS_OFF:ACTS_OFF + ACTION_DIM]
    actions_prob = packed[..., APROB_OFF:APROB_OFF + ACTION_DIM]
    return goals, goals_prob, actions, actions_prob, mental


# ----------------------------- model wrapper -------------------------------
class ToMNetPallas:
    def __init__(self, key):
        ks = jax.random.split(key, 11)
        s = 0.1
        conv_w = s * jax.random.normal(ks[0], (KRAW, OC), jnp.float32)
        conv_b = s * jax.random.normal(ks[1], (1, OC), jnp.float32)
        fc_w = s * jax.random.normal(ks[2], (OC, E), jnp.float32)
        fc_b = s * jax.random.normal(ks[3], (1, E), jnp.float32)
        w_ih = s * jax.random.normal(ks[4], (E, 4 * M), jnp.float32)
        w_hh = s * jax.random.normal(ks[5], (M, 4 * M), jnp.float32)
        b_lstm = s * jax.random.normal(ks[6], (1, 4 * M), jnp.float32)
        goal_w = s * jax.random.normal(ks[7], (M, GOAL_DIM), jnp.float32)
        goal_b = s * jax.random.normal(ks[8], (1, GOAL_DIM), jnp.float32)
        act_w = s * jax.random.normal(ks[9], (M, ACTION_DIM), jnp.float32)
        act_b = s * jax.random.normal(ks[10], (1, ACTION_DIM), jnp.float32)

        # (M, 128) head weight: identity block copies mental to lanes [0:M),
        # goal_w / act_w land directly at their packed-output lane offsets.
        head_w_full = jnp.zeros((M, OUT_PACK), jnp.float32)
        head_w_full = head_w_full.at[:, 0:M].set(jnp.eye(M, dtype=jnp.float32))
        head_w_full = head_w_full.at[:, GOALS_OFF:GOALS_OFF + GOAL_DIM].set(goal_w)
        head_w_full = head_w_full.at[:, ACTS_OFF:ACTS_OFF + ACTION_DIM].set(act_w)
        head_b_full = jnp.zeros((1, OUT_PACK), jnp.float32)
        head_b_full = head_b_full.at[:, GOALS_OFF:GOALS_OFF + GOAL_DIM].set(goal_b)
        head_b_full = head_b_full.at[:, ACTS_OFF:ACTS_OFF + ACTION_DIM].set(act_b)

        self.params = {
            "conv_w": conv_w, "conv_b": conv_b, "fc_w": fc_w, "fc_b": fc_b,
            "w_ih": w_ih, "w_hh": w_hh, "b_lstm": b_lstm,
            "head_w_full": head_w_full, "head_b_full": head_b_full,
        }
        # Raw weights kept for the pure-JAX reference check.
        self.raw = dict(conv_w=conv_w, conv_b=conv_b, fc_w=fc_w, fc_b=fc_b,
                        w_ih=w_ih, w_hh=w_hh, b_lstm=b_lstm,
                        goal_w=goal_w, goal_b=goal_b, act_w=act_w, act_b=act_b)
        self.mental_states = None

    def forward(self, environment, reinitialize_mental=True, recalculate_mental=True,
                predefined_goals=None, goal_reached=None):
        if recalculate_mental:
            return self.forward_from_new_mental(environment, reinitialize_mental)
        # TODO(synk): forward_action_layer not implemented — it relies on self.fc_action
        #             (never defined in the reference __init__) plus boolean gather /
        #             index_put_ scatter.
        raise NotImplementedError("forward_action_layer")

    def forward_from_new_mental(self, environment, reinitialize_mental=True):
        # TODO(synk): reinitialize_mental=False (carrying the LSTM hidden state across
        #             calls) depends on the factory-defined mental_net statefulness;
        #             only the zero-initialized-hidden path is implemented.
        goals, goals_prob, actions, actions_prob, mental = _tomnet_forward(
            environment, self.params)
        self.mental_states = mental                           # (B, T, M), batch_first
        return goals, goals_prob, actions, actions_prob


# ----------------------------- pure-JAX reference --------------------------
def reference_forward(environment, raw):
    b, t = environment.shape[0], environment.shape[1]
    frames = environment.reshape(b * t, C, H, W)
    patches = extract_patches_3x3(frames)                                 # (b*t, HW, 36)
    conv = jnp.maximum(jnp.einsum("npk,ko->npo", patches, raw["conv_w"]) + raw["conv_b"], 0.0)
    rep = jnp.maximum(conv.mean(axis=1) @ raw["fc_w"] + raw["fc_b"], 0.0)  # (b*t, E)
    rep = rep.reshape(b, t, E)
    h = jnp.zeros((b, M), jnp.float32)
    c = jnp.zeros((b, M), jnp.float32)
    ms = []
    for step in range(t):
        gates = rep[:, step, :] @ raw["w_ih"] + h @ raw["w_hh"] + raw["b_lstm"]
        i = jax.nn.sigmoid(gates[:, :M])
        f = jax.nn.sigmoid(gates[:, M:2 * M])
        g = jnp.tanh(gates[:, 2 * M:3 * M])
        o = jax.nn.sigmoid(gates[:, 3 * M:])
        c = f * c + i * g
        h = o * jnp.tanh(c)
        ms.append(h)
    mental = jnp.stack(ms, axis=1)                                        # (b, t, M)
    goals = mental @ raw["goal_w"] + raw["goal_b"]
    actions = mental @ raw["act_w"] + raw["act_b"]
    return (goals, jax.nn.log_softmax(goals, axis=-1),
            actions, jax.nn.log_softmax(actions, axis=-1), mental)


# ----------------------------- main -----------------------------------------
if __name__ == "__main__":
    key = jax.random.PRNGKey(0)
    environment = jax.random.normal(key, (B, T, C, H, W), jnp.float32)

    model = ToMNetPallas(jax.random.PRNGKey(42))
    goals, goals_prob, actions, actions_prob = model.forward(
        environment, reinitialize_mental=True)
    jax.block_until_ready((goals, goals_prob, actions, actions_prob))

    assert goals.shape == (B, T, GOAL_DIM)
    assert goals_prob.shape == (B, T, GOAL_DIM)
    assert actions.shape == (B, T, ACTION_DIM)
    assert actions_prob.shape == (B, T, ACTION_DIM)
    assert model.mental_states.shape == (B, T, M)
    # log-softmax rows must exponentiate-sum to 1
    assert jnp.allclose(jnp.exp(goals_prob).sum(-1), 1.0, atol=1e-5)
    assert jnp.allclose(jnp.exp(actions_prob).sum(-1), 1.0, atol=1e-5)

    # numerical check against a pure-JAX reference of the same forward pass
    rg, rgp, ra, rap, rm = reference_forward(environment, model.raw)
    for got, ref in ((goals, rg), (goals_prob, rgp), (actions, ra),
                     (actions_prob, rap), (model.mental_states, rm)):
        assert jnp.allclose(got, ref, atol=1e-4, rtol=1e-4), \
            float(jnp.abs(got - ref).max())

    print("KERNEL_OK")
</pallas_src>

<mosaic_0001>
module attributes {stable_mosaic.version = 11 : i64} {
  func.func @tomnet_fused_kernel(%arg0: memref<512x36xf32, #tpu.memory_space<vmem>>, %arg1: memref<32x512xf32, #tpu.memory_space<vmem>>, %arg2: memref<36x16xf32, #tpu.memory_space<vmem>>, %arg3: memref<1x16xf32, #tpu.memory_space<vmem>>, %arg4: memref<16x32xf32, #tpu.memory_space<vmem>>, %arg5: memref<1x32xf32, #tpu.memory_space<vmem>>, %arg6: memref<32x128xf32, #tpu.memory_space<vmem>>, %arg7: memref<32x128xf32, #tpu.memory_space<vmem>>, %arg8: memref<1x128xf32, #tpu.memory_space<vmem>>, %arg9: memref<32x128xf32, #tpu.memory_space<vmem>>, %arg10: memref<1x128xf32, #tpu.memory_space<vmem>>, %arg11: memref<32x128xf32, #tpu.memory_space<vmem>>) attributes {dimension_semantics = [], scalar_prefetch = 0 : i64, scratch_operands = 0 : i64, tpu.core_type = #tpu.core_type<tc>} {
    %c0 = arith.constant 0 : index
    %c0_0 = arith.constant 0 : index
    %0 = vector.load %arg0[%c0, %c0_0] : memref<512x36xf32, #tpu.memory_space<vmem>>, vector<512x36xf32>
    %c0_1 = arith.constant 0 : index
    %c0_2 = arith.constant 0 : index
    %1 = vector.load %arg2[%c0_1, %c0_2] : memref<36x16xf32, #tpu.memory_space<vmem>>, vector<36x16xf32>
    %cst = arith.constant dense<0.000000e+00> : vector<512x16xf32>
    %2 = tpu.matmul %0, %1, %cst {dimension_numbers = #tpu.dot_dimension_numbers<[1], [0], [0], [1], [0, 0, 1, 1], [], []>} : vector<512x36xf32>, vector<36x16xf32>, vector<512x16xf32> -> vector<512x16xf32>
    %c0_3 = arith.constant 0 : index
    %c0_4 = arith.constant 0 : index
    %3 = vector.load %arg3[%c0_3, %c0_4] : memref<1x16xf32, #tpu.memory_space<vmem>>, vector<1x16xf32>
    %4 = vector.broadcast %3 : vector<1x16xf32> to vector<512x16xf32>
    %5 = arith.addf %2, %4 : vector<512x16xf32>
    %cst_5 = arith.constant 0.000000e+00 : f32
    %6 = vector.broadcast %cst_5 : f32 to vector<512x16xf32>
    %7 = arith.maximumf %5, %6 : vector<512x16xf32>
    %c0_6 = arith.constant 0 : index
    %c0_7 = arith.constant 0 : index
    %8 = vector.load %arg1[%c0_6, %c0_7] : memref<32x512xf32, #tpu.memory_space<vmem>>, vector<32x512xf32>
    %cst_8 = arith.constant dense<0.000000e+00> : vector<32x16xf32>
    %9 = tpu.matmul %8, %7, %cst_8 {dimension_numbers = #tpu.dot_dimension_numbers<[1], [0], [0], [1], [0, 0, 1, 1], [], []>} : vector<32x512xf32>, vector<512x16xf32>, vector<32x16xf32> -> vector<32x16xf32>
    %c0_9 = arith.constant 0 : index
    %c0_10 = arith.constant 0 : index
    %10 = vector.load %arg4[%c0_9, %c0_10] : memref<16x32xf32, #tpu.memory_space<vmem>>, vector<16x32xf32>
    %cst_11 = arith.constant dense<0.000000e+00> : vector<32x32xf32>
    %11 = tpu.matmul %9, %10, %cst_11 {dimension_numbers = #tpu.dot_dimension_numbers<[1], [0], [0], [1], [0, 0, 1, 1], [], []>} : vector<32x16xf32>, vector<16x32xf32>, vector<32x32xf32> -> vector<32x32xf32>
    %c0_12 = arith.constant 0 : index
    %c0_13 = arith.constant 0 : index
    %12 = vector.load %arg5[%c0_12, %c0_13] : memref<1x32xf32, #tpu.memory_space<vmem>>, vector<1x32xf32>
    %13 = vector.broadcast %12 : vector<1x32xf32> to vector<32x32xf32>
    %14 = arith.addf %11, %13 : vector<32x32xf32>
    %cst_14 = arith.constant 0.000000e+00 : f32
    %15 = vector.broadcast %cst_14 : f32 to vector<32x32xf32>
    %16 = arith.maximumf %14, %15 : vector<32x32xf32>
    %c0_15 = arith.constant 0 : index
    %c0_16 = arith.constant 0 : index
    %17 = vector.load %arg6[%c0_15, %c0_16] : memref<32x128xf32, #tpu.memory_space<vmem>>, vector<32x128xf32>
    %cst_17 = arith.constant dense<0.000000e+00> : vector<32x128xf32>
    %18 = tpu.matmul %16, %17, %cst_17 {dimension_numbers = #tpu.dot_dimension_numbers<[1], [0], [0], [1], [0, 0, 1, 1], [], []>} : vector<32x32xf32>, vector<32x128xf32>, vector<32x128xf32> -> vector<32x128xf32>
    %c0_18 = arith.constant 0 : index
    %c0_19 = arith.constant 0 : index
    %19 = vector.load %arg8[%c0_18, %c0_19] : memref<1x128xf32, #tpu.memory_space<vmem>>, vector<1x128xf32>
    %20 = vector.broadcast %19 : vector<1x128xf32> to vector<32x128xf32>
    %21 = arith.addf %18, %20 : vector<32x128xf32>
    %c0_20 = arith.constant 0 : index
    %c0_21 = arith.constant 0 : index
    %22 = vector.load %arg7[%c0_20, %c0_21] : memref<32x128xf32, #tpu.memory_space<vmem>>, vector<32x128xf32>
    %cst_22 = arith.constant 0.000000e+00 : f32
    %23 = vector.broadcast %cst_22 : f32 to vector<8x32xf32>
    %cst_23 = arith.constant 0.000000e+00 : f32
    %24 = vector.broadcast %cst_23 : f32 to vector<8x32xf32>
    %25 = vector.extract_strided_slice %21 {offsets = [0, 0], sizes = [8, 128], strides = [1, 1]} : vector<32x128xf32> to vector<8x128xf32>
    %cst_24 = arith.constant dense<0.000000e+00> : vector<8x128xf32>
    %26 = tpu.matmul %23, %22, %cst_24 {dimension_numbers = #tpu.dot_dimension_numbers<[1], [0], [0], [1], [0, 0, 1, 1], [], []>} : vector<8x32xf32>, vector<32x128xf32>, vector<8x128xf32> -> vector<8x128xf32>
    %27 = arith.addf %25, %26 : vector<8x128xf32>
    %28 = vector.extract_strided_slice %27 {offsets = [0, 0], sizes = [8, 32], strides = [1, 1]} : vector<8x128xf32> to vector<8x32xf32>
    %29 = arith.negf %28 : vector<8x32xf32>
    %30 = math.exp %29 : vector<8x32xf32>
    %cst_25 = arith.constant 1.000000e+00 : f32
    %31 = vector.broadcast %cst_25 : f32 to vector<8x32xf32>
    %32 = arith.addf %31, %30 : vector<8x32xf32>
    %33 = arith.divf %31, %32 : vector<8x32xf32>
    %34 = vector.extract_strided_slice %27 {offsets = [0, 32], sizes = [8, 32], strides = [1, 1]} : vector<8x128xf32> to vector<8x32xf32>
    %35 = arith.negf %34 : vector<8x32xf32>
    %36 = math.exp %35 : vector<8x32xf32>
    %cst_26 = arith.constant 1.000000e+00 : f32
    %37 = vector.broadcast %cst_26 : f32 to vector<8x32xf32>
    %38 = arith.addf %37, %36 : vector<8x32xf32>
    %39 = arith.divf %37, %38 : vector<8x32xf32>
    %40 = vector.extract_strided_slice %27 {offsets = [0, 64], sizes = [8, 32], strides = [1, 1]} : vector<8x128xf32> to vector<8x32xf32>
    %41 = math.tanh %40 : vector<8x32xf32>
    %42 = vector.extract_strided_slice %27 {offsets = [0, 96], sizes = [8, 32], strides = [1, 1]} : vector<8x128xf32> to vector<8x32xf32>
    %43 = arith.negf %42 : vector<8x32xf32>
    %44 = math.exp %43 : vector<8x32xf32>
    %cst_27 = arith.constant 1.000000e+00 : f32
    %45 = vector.broadcast %cst_27 : f32 to vector<8x32xf32>
    %46 = arith.addf %45, %44 : vector<8x32xf32>
    %47 = arith.divf %45, %46 : vector<8x32xf32>
    %48 = arith.mulf %39, %24 : vector<8x32xf32>
    %49 = arith.mulf %33, %41 : vector<8x32xf32>
    %50 = arith.addf %48, %49 : vector<8x32xf32>
    %51 = math.tanh %50 : vector<8x32xf32>
    %52 = arith.mulf %47, %51 : vector<8x32xf32>
    %53 = vector.extract_strided_slice %21 {offsets = [8, 0], sizes = [8, 128], strides = [1, 1]} : vector<32x128xf32> to vector<8x128xf32>
    %cst_28 = arith.constant dense<0.000000e+00> : vector<8x128xf32>
    %54 = tpu.matmul %52, %22, %cst_28 {dimension_numbers = #tpu.dot_dimension_numbers<[1], [0], [0], [1], [0, 0, 1, 1], [], []>} : vector<8x32xf32>, vector<32x128xf32>, vector<8x128xf32> -> vector<8x128xf32>
    %55 = arith.addf %53, %54 : vector<8x128xf32>
    %56 = vector.extract_strided_slice %55 {offsets = [0, 0], sizes = [8, 32], strides = [1, 1]} : vector<8x128xf32> to vector<8x32xf32>
    %57 = arith.negf %56 : vector<8x32xf32>
    %58 = math.exp %57 : vector<8x32xf32>
    %cst_29 = arith.constant 1.000000e+00 : f32
    %59 = vector.broadcast %cst_29 : f32 to vector<8x32xf32>
    %60 = arith.addf %59, %58 : vector<8x32xf32>
    %61 = arith.divf %59, %60 : vector<8x32xf32>
    %62 = vector.extract_strided_slice %55 {offsets = [0, 32], sizes = [8, 32], strides = [1, 1]} : vector<8x128xf32> to vector<8x32xf32>
    %63 = arith.negf %62 : vector<8x32xf32>
    %64 = math.exp %63 : vector<8x32xf32>
    %cst_30 = arith.constant 1.000000e+00 : f32
    %65 = vector.broadcast %cst_30 : f32 to vector<8x32xf32>
    %66 = arith.addf %65, %64 : vector<8x32xf32>
    %67 = arith.divf %65, %66 : vector<8x32xf32>
    %68 = vector.extract_strided_slice %55 {offsets = [0, 64], sizes = [8, 32], strides = [1, 1]} : vector<8x128xf32> to vector<8x32xf32>
    %69 = math.tanh %68 : vector<8x32xf32>
    %70 = vector.extract_strided_slice %55 {offsets = [0, 96], sizes = [8, 32], strides = [1, 1]} : vector<8x128xf32> to vector<8x32xf32>
    %71 = arith.negf %70 : vector<8x32xf32>
    %72 = math.exp %71 : vector<8x32xf32>
    %cst_31 = arith.constant 1.000000e+00 : f32
    %73 = vector.broadcast %cst_31 : f32 to vector<8x32xf32>
    %74 = arith.addf %73, %72 : vector<8x32xf32>
    %75 = arith.divf %73, %74 : vector<8x32xf32>
    %76 = arith.mulf %67, %50 : vector<8x32xf32>
    %77 = arith.mulf %61, %69 : vector<8x32xf32>
    %78 = arith.addf %76, %77 : vector<8x32xf32>
    %79 = math.tanh %78 : vector<8x32xf32>
    %80 = arith.mulf %75, %79 : vector<8x32xf32>
    %81 = vector.extract_strided_slice %21 {offsets = [16, 0], sizes = [8, 128], strides = [1, 1]} : vector<32x128xf32> to vector<8x128xf32>
    %cst_32 = arith.constant dense<0.000000e+00> : vector<8x128xf32>
    %82 = tpu.matmul %80, %22, %cst_32 {dimension_numbers = #tpu.dot_dimension_numbers<[1], [0], [0], [1], [0, 0, 1, 1], [], []>} : vector<8x32xf32>, vector<32x128xf32>, vector<8x128xf32> -> vector<8x128xf32>
    %83 = arith.addf %81, %82 : vector<8x128xf32>
    %84 = vector.extract_strided_slice %83 {offsets = [0, 0], sizes = [8, 32], strides = [1, 1]} : vector<8x128xf32> to vector<8x32xf32>
    %85 = arith.negf %84 : vector<8x32xf32>
    %86 = math.exp %85 : vector<8x32xf32>
    %cst_33 = arith.constant 1.000000e+00 : f32
    %87 = vector.broadcast %cst_33 : f32 to vector<8x32xf32>
    %88 = arith.addf %87, %86 : vector<8x32xf32>
    %89 = arith.divf %87, %88 : vector<8x32xf32>
    %90 = vector.extract_strided_slice %83 {offsets = [0, 32], sizes = [8, 32], strides = [1, 1]} : vector<8x128xf32> to vector<8x32xf32>
    %91 = arith.negf %90 : vector<8x32xf32>
    %92 = math.exp %91 : vector<8x32xf32>
    %cst_34 = arith.constant 1.000000e+00 : f32
    %93 = vector.broadcast %cst_34 : f32 to vector<8x32xf32>
    %94 = arith.addf %93, %92 : vector<8x32xf32>
    %95 = arith.divf %93, %94 : vector<8x32xf32>
    %96 = vector.extract_strided_slice %83 {offsets = [0, 64], sizes = [8, 32], strides = [1, 1]} : vector<8x128xf32> to vector<8x32xf32>
    %97 = math.tanh %96 : vector<8x32xf32>
    %98 = vector.extract_strided_slice %83 {offsets = [0, 96], sizes = [8, 32], strides = [1, 1]} : vector<8x128xf32> to vector<8x32xf32>
    %99 = arith.negf %98 : vector<8x32xf32>
    %100 = math.exp %99 : vector<8x32xf32>
    %cst_35 = arith.constant 1.000000e+00 : f32
    %101 = vector.broadcast %cst_35 : f32 to vector<8x32xf32>
    %102 = arith.addf %101, %100 : vector<8x32xf32>
    %103 = arith.divf %101, %102 : vector<8x32xf32>
    %104 = arith.mulf %95, %78 : vector<8x32xf32>
    %105 = arith.mulf %89, %97 : vector<8x32xf32>
    %106 = arith.addf %104, %105 : vector<8x32xf32>
    %107 = math.tanh %106 : vector<8x32xf32>
    %108 = arith.mulf %103, %107 : vector<8x32xf32>
    %109 = vector.extract_strided_slice %21 {offsets = [24, 0], sizes = [8, 128], strides = [1, 1]} : vector<32x128xf32> to vector<8x128xf32>
    %cst_36 = arith.constant dense<0.000000e+00> : vector<8x128xf32>
    %110 = tpu.matmul %108, %22, %cst_36 {dimension_numbers = #tpu.dot_dimension_numbers<[1], [0], [0], [1], [0, 0, 1, 1], [], []>} : vector<8x32xf32>, vector<32x128xf32>, vector<8x128xf32> -> vector<8x128xf32>
    %111 = arith.addf %109, %110 : vector<8x128xf32>
    %112 = vector.extract_strided_slice %111 {offsets = [0, 0], sizes = [8, 32], strides = [1, 1]} : vector<8x128xf32> to vector<8x32xf32>
    %113 = arith.negf %112 : vector<8x32xf32>
    %114 = math.exp %113 : vector<8x32xf32>
    %cst_37 = arith.constant 1.000000e+00 : f32
    %115 = vector.broadcast %cst_37 : f32 to vector<8x32xf32>
    %116 = arith.addf %115, %114 : vector<8x32xf32>
    %117 = arith.divf %115, %116 : vector<8x32xf32>
    %118 = vector.extract_strided_slice %111 {offsets = [0, 32], sizes = [8, 32], strides = [1, 1]} : vector<8x128xf32> to vector<8x32xf32>
    %119 = arith.negf %118 : vector<8x32xf32>
    %120 = math.exp %119 : vector<8x32xf32>
    %cst_38 = arith.constant 1.000000e+00 : f32
    %121 = vector.broadcast %cst_38 : f32 to vector<8x32xf32>
    %122 = arith.addf %121, %120 : vector<8x32xf32>
    %123 = arith.divf %121, %122 : vector<8x32xf32>
    %124 = vector.extract_strided_slice %111 {offsets = [0, 64], sizes = [8, 32], strides = [1, 1]} : vector<8x128xf32> to vector<8x32xf32>
    %125 = math.tanh %124 : vector<8x32xf32>
    %126 = vector.extract_strided_slice %111 {offsets = [0, 96], sizes = [8, 32], strides = [1, 1]} : vector<8x128xf32> to vector<8x32xf32>
    %127 = arith.negf %126 : vector<8x32xf32>
    %128 = math.exp %127 : vector<8x32xf32>
    %cst_39 = arith.constant 1.000000e+00 : f32
    %129 = vector.broadcast %cst_39 : f32 to vector<8x32xf32>
    %130 = arith.addf %129, %128 : vector<8x32xf32>
    %131 = arith.divf %129, %130 : vector<8x32xf32>
    %132 = arith.mulf %123, %106 : vector<8x32xf32>
    %133 = arith.mulf %117, %125 : vector<8x32xf32>
    %134 = arith.addf %132, %133 : vector<8x32xf32>
    %135 = math.tanh %134 : vector<8x32xf32>
    %136 = arith.mulf %131, %135 : vector<8x32xf32>
    %137 = tpu.concatenate %52, %80, %108, %136 in 0 : vector<8x32xf32>, vector<8x32xf32>, vector<8x32xf32>, vector<8x32xf32> -> vector<32x32xf32>
    %c0_40 = arith.constant 0 : index
    %c0_41 = arith.constant 0 : index
    %138 = vector.load %arg9[%c0_40, %c0_41] : memref<32x128xf32, #tpu.memory_space<vmem>>, vector<32x128xf32>
    %cst_42 = arith.constant dense<0.000000e+00> : vector<32x128xf32>
    %139 = tpu.matmul %137, %138, %cst_42 {dimension_numbers = #tpu.dot_dimension_numbers<[1], [0], [0], [1], [0, 0, 1, 1], [], []>} : vector<32x32xf32>, vector<32x128xf32>, vector<32x128xf32> -> vector<32x128xf32>
    %c0_43 = arith.constant 0 : index
    %c0_44 = arith.constant 0 : index
    %140 = vector.load %arg10[%c0_43, %c0_44] : memref<1x128xf32, #tpu.memory_space<vmem>>, vector<1x128xf32>
    %141 = vector.broadcast %140 : vector<1x128xf32> to vector<32x128xf32>
    %142 = arith.addf %139, %141 : vector<32x128xf32>
    %143 = vector.extract_strided_slice %142 {offsets = [0, 32], sizes = [32, 5], strides = [1, 1]} : vector<32x128xf32> to vector<32x5xf32>
    %144 = vector.extract_strided_slice %142 {offsets = [0, 42], sizes = [32, 5], strides = [1, 1]} : vector<32x128xf32> to vector<32x5xf32>
    %145 = vector.extract_strided_slice %142 {offsets = [0, 0], sizes = [32, 37], strides = [1, 1]} : vector<32x128xf32> to vector<32x37xf32>
    %cst_45 = arith.constant dense<0xFF800000> : vector<32xf32>
    %146 = vector.multi_reduction <maximumf>, %143, %cst_45 [1] : vector<32x5xf32> to vector<32xf32>
    %147 = vector.shape_cast %146 : vector<32xf32> to vector<32x1xf32>
    %148 = vector.broadcast %147 : vector<32x1xf32> to vector<32x5xf32>
    %149 = arith.subf %143, %148 : vector<32x5xf32>
    %150 = math.exp %149 : vector<32x5xf32>
    %cst_46 = arith.constant dense<0.000000e+00> : vector<32xf32>
    %151 = vector.multi_reduction <add>, %150, %cst_46 [1] : vector<32x5xf32> to vector<32xf32>
    %152 = vector.shape_cast %151 : vector<32xf32> to vector<32x1xf32>
    %153 = math.log %152 : vector<32x1xf32>
    %154 = arith.addf %147, %153 : vector<32x1xf32>
    %155 = vector.broadcast %154 : vector<32x1xf32> to vector<32x5xf32>
    %156 = arith.subf %143, %155 : vector<32x5xf32>
    %cst_47 = arith.constant dense<0xFF800000> : vector<32xf32>
    %157 = vector.multi_reduction <maximumf>, %144, %cst_47 [1] : vector<32x5xf32> to vector<32xf32>
    %158 = vector.shape_cast %157 : vector<32xf32> to vector<32x1xf32>
    %159 = vector.broadcast %158 : vector<32x1xf32> to vector<32x5xf32>
    %160 = arith.subf %144, %159 : vector<32x5xf32>
    %161 = math.exp %160 : vector<32x5xf32>
    %cst_48 = arith.constant dense<0.000000e+00> : vector<32xf32>
    %162 = vector.multi_reduction <add>, %161, %cst_48 [1] : vector<32x5xf32> to vector<32xf32>
    %163 = vector.shape_cast %162 : vector<32xf32> to vector<32x1xf32>
    %164 = math.log %163 : vector<32x1xf32>
    %165 = arith.addf %158, %164 : vector<32x1xf32>
    %166 = vector.broadcast %165 : vector<32x1xf32> to vector<32x5xf32>
    %167 = arith.subf %144, %166 : vector<32x5xf32>
    %cst_49 = arith.constant 0.000000e+00 : f32
    %168 = vector.broadcast %cst_49 : f32 to vector<32x76xf32>
    %169 = tpu.concatenate %145, %156, %144, %167, %168 in 1 : vector<32x37xf32>, vector<32x5xf32>, vector<32x5xf32>, vector<32x5xf32>, vector<32x76xf32> -> vector<32x128xf32>
    %c0_50 = arith.constant 0 : index
    %c0_51 = arith.constant 0 : index
    %170 = vector.load %arg11[%c0_50, %c0_51] : memref<32x128xf32, #tpu.memory_space<vmem>>, vector<32x128xf32>
    tpu.vector_store %arg11[%c0_50, %c0_51], %169 {strides = array<i32>} : memref<32x128xf32, #tpu.memory_space<vmem>>, vector<32x128xf32>,
    return
  }
}

</mosaic_0001>

<llo_original>
// kernel: _tomnet_forward.1
$region0: #{_tomnet_forward.1}
  #allocation0 [shape = 'u32[]', space=smem, size = 0x4, offset = 0x4, fixed_abs, tag = 'smem constant byte address 0x4 - core index']
  #allocation1 [shape = 'u32[144,128]{1,0:T(1,128)}', space=vmem, size = 0x12000, scoped, tag = 'internal scratch']
  %s0 = inlined_call_operand.vmem [shape: f32[512,36], index: 0, kind: input, shape index: {}]
  %s1 = inlined_call_operand.vmem [shape: f32[32,512], index: 1, kind: input, shape index: {}]
  %s2 = inlined_call_operand.vmem [shape: f32[36,16], index: 2, kind: input, shape index: {}]
  %s3 = inlined_call_operand.vmem [shape: f32[1,16], index: 3, kind: input, shape index: {}]
  %s4 = inlined_call_operand.vmem [shape: f32[16,32], index: 4, kind: input, shape index: {}]
  %s5 = inlined_call_operand.vmem [shape: f32[1,32], index: 5, kind: input, shape index: {}]
  %s6 = inlined_call_operand.vmem [shape: f32[32,128], index: 6, kind: input, shape index: {}]
  %s7 = inlined_call_operand.vmem [shape: f32[32,128], index: 7, kind: input, shape index: {}]
  %s8 = inlined_call_operand.vmem [shape: f32[1,128], index: 8, kind: input, shape index: {}]
  %s9 = inlined_call_operand.vmem [shape: f32[32,128], index: 9, kind: input, shape index: {}]
  %s10 = inlined_call_operand.vmem [shape: f32[1,128], index: 10, kind: input, shape index: {}]
  %s11 = inlined_call_operand.vmem [shape: f32[32,128], index: 11, kind: output, shape index: {}]
  %s12 = sld [smem:[#allocation0]]
  $region54: #{_tomnet_forward.1} parent=0
    _
  %s14 = ssub.s32 1, %s12
  %s15 = scalar_select 0, %s14, %s12
  // Predicated region
  $region2: #{_tomnet_forward.1} parent=0 // pred_check
    _
  $region3: #{_tomnet_forward.1} parent=0 // pred_check_branch
    %17 = sbr.rel (0) target = $region5
  $region4: #{_tomnet_forward.1} parent=0 // pred_region
    _
  $region5: #{_tomnet_forward.1} parent=0 // pred_fallthru
    _
  // Predicated region
  $region6: #{_tomnet_forward.1} parent=0 // pred_check
    _
  $region7: #{_tomnet_forward.1} parent=0 // pred_check_branch
    %19 = sbr.rel (0) target = $region9
  $region8: #{_tomnet_forward.1} parent=0 // pred_region
    _
  $region9: #{_tomnet_forward.1} parent=0 // pred_fallthru
    _
  // Predicated region
  $region10: #{_tomnet_forward.1} parent=0 // pred_check
    _
  $region11: #{_tomnet_forward.1} parent=0 // pred_check_branch
    %21 = sbr.rel (0) target = $region13
  $region12: #{_tomnet_forward.1} parent=0 // pred_region
    _
  $region13: #{_tomnet_forward.1} parent=0 // pred_fallthru
    _
  // Predicated region
  $region14: #{_tomnet_forward.1} parent=0 // pred_check
    _
  $region15: #{_tomnet_forward.1} parent=0 // pred_check_branch
    %23 = sbr.rel (0) target = $region17
  $region16: #{_tomnet_forward.1} parent=0 // pred_region
    _
  $region17: #{_tomnet_forward.1} parent=0 // pred_fallthru
    _
  // Predicated region
  $region18: #{_tomnet_forward.1} parent=0 // pred_check
    _
  $region19: #{_tomnet_forward.1} parent=0 // pred_check_branch
    %25 = sbr.rel (0) target = $region21
  $region20: #{_tomnet_forward.1} parent=0 // pred_region
    _
  $region21: #{_tomnet_forward.1} parent=0 // pred_fallthru
    _
  // Predicated region
  $region22: #{_tomnet_forward.1} parent=0 // pred_check
    _
  $region23: #{_tomnet_forward.1} parent=0 // pred_check_branch
    %27 = sbr.rel (0) target = $region25
  $region24: #{_tomnet_forward.1} parent=0 // pred_region
    _
  $region25: #{_tomnet_forward.1} parent=0 // pred_fallthru
    _
  // Predicated region
  $region26: #{_tomnet_forward.1} parent=0 // pred_check
    _
  $region27: #{_tomnet_forward.1} parent=0 // pred_check_branch
    %29 = sbr.rel (0) target = $region29
  $region28: #{_tomnet_forward.1} parent=0 // pred_region
    _
  $region29: #{_tomnet_forward.1} parent=0 // pred_fallthru
    _
  // Predicated region
  $region30: #{_tomnet_forward.1} parent=0 // pred_check
    _
  $region31: #{_tomnet_forward.1} parent=0 // pred_check_branch
    %31 = sbr.rel (0) target = $region33
  $region32: #{_tomnet_forward.1} parent=0 // pred_region
    _
  $region33: #{_tomnet_forward.1} parent=0 // pred_fallthru
    _
  // Predicated region
  $region34: #{_tomnet_forward.1} parent=0 // pred_check
    _
  $region35: #{_tomnet_forward.1} parent=0 // pred_check_branch
    %33 = sbr.rel (0) target = $region37
  $region36: #{_tomnet_forward.1} parent=0 // pred_region
    _
  $region37: #{_tomnet_forward.1} parent=0 // pred_fallthru
    _
  // Predicated region
  $region38: #{_tomnet_forward.1} parent=0 // pred_check
    _
  $region39: #{_tomnet_forward.1} parent=0 // pred_check_branch
    %35 = sbr.rel (0) target = $region41
  $region40: #{_tomnet_forward.1} parent=0 // pred_region
    _
  $region41: #{_tomnet_forward.1} parent=0 // pred_fallthru
    _
  // Predicated region
  $region42: #{_tomnet_forward.1} parent=0 // pred_check
    _
  $region43: #{_tomnet_forward.1} parent=0 // pred_check_branch
    %37 = sbr.rel (0) target = $region45
  $region44: #{_tomnet_forward.1} parent=0 // pred_region
    _
  $region45: #{_tomnet_forward.1} parent=0 // pred_fallthru
    _
  %v38 = vld [vmem:[%s0] sm:$0xff]
  %v39 = vld [vmem:[%s0 + $0x8] sm:$0xff]
  %v40 = vld [vmem:[%s0 + $0x10] sm:$0xff]
  %v41 = vld [vmem:[%s0 + $0x18] sm:$0xff]
  %v42 = vld [vmem:[%s0 + $0x20] sm:$0xff]
  %v43 = vld [vmem:[%s0 + $0x28] sm:$0xff]
  %v44 = vld [vmem:[%s0 + $0x30] sm:$0xff]
  %v45 = vld [vmem:[%s0 + $0x38] sm:$0xff]
  %v46 = vld [vmem:[%s0 + $0x40] sm:$0xff]
  %v47 = vld [vmem:[%s0 + $0x48] sm:$0xff]
  %v48 = vld [vmem:[%s0 + $0x50] sm:$0xff]
  %v49 = vld [vmem:[%s0 + $0x58] sm:$0xff]
  %v50 = vld [vmem:[%s0 + $0x60] sm:$0xff]
  %v51 = vld [vmem:[%s0 + $0x68] sm:$0xff]
  %v52 = vld [vmem:[%s0 + $0x70] sm:$0xff]
  %v53 = vld [vmem:[%s0 + $0x78] sm:$0xff]
  %v54 = vld [vmem:[%s0 + $0x80] sm:$0xff]
  %v55 = vld [vmem:[%s0 + $0x88] sm:$0xff]
  %v56 = vld [vmem:[%s0 + $0x90] sm:$0xff]
  %v57 = vld [vmem:[%s0 + $0x98] sm:$0xff]
  %v58 = vld [vmem:[%s0 + $0xa0] sm:$0xff]
  %v59 = vld [vmem:[%s0 + $0xa8] sm:$0xff]
  %v60 = vld [vmem:[%s0 + $0xb0] sm:$0xff]
  %v61 = vld [vmem:[%s0 + $0xb8] sm:$0xff]
  %v62 = vld [vmem:[%s0 + $0xc0] sm:$0xff]
  %v63 = vld [vmem:[%s0 + $0xc8] sm:$0xff]
  %v64 = vld [vmem:[%s0 + $0xd0] sm:$0xff]
  %v65 = vld [vmem:[%s0 + $0xd8] sm:$0xff]
  %v66 = vld [vmem:[%s0 + $0xe0] sm:$0xff]
  %v67 = vld [vmem:[%s0 + $0xe8] sm:$0xff]
  %v68 = vld [vmem:[%s0 + $0xf0] sm:$0xff]
  %v69 = vld [vmem:[%s0 + $0xf8] sm:$0xff]
  %v70 = vld [vmem:[%s0 + $0x100] sm:$0xff]
  %v71 = vld [vmem:[%s0 + $0x108] sm:$0xff]
  %v72 = vld [vmem:[%s0 + $0x110] sm:$0xff]
  %v73 = vld [vmem:[%s0 + $0x118] sm:$0xff]
  %v74 = vld [vmem:[%s0 + $0x120] sm:$0xff]
  %v75 = vld [vmem:[%s0 + $0x128] sm:$0xff]
  %v76 = vld [vmem:[%s0 + $0x130] sm:$0xff]
  %v77 = vld [vmem:[%s0 + $0x138] sm:$0xff]
  %v78 = vld [vmem:[%s0 + $0x140] sm:$0xff]
  %v79 = vld [vmem:[%s0 + $0x148] sm:$0xff]
  %v80 = vld [vmem:[%s0 + $0x150] sm:$0xff]
  %v81 = vld [vmem:[%s0 + $0x158] sm:$0xff]
  %v82 = vld [vmem:[%s0 + $0x160] sm:$0xff]
  %v83 = vld [vmem:[%s0 + $0x168] sm:$0xff]
  %v84 = vld [vmem:[%s0 + $0x170] sm:$0xff]
  %v85 = vld [vmem:[%s0 + $0x178] sm:$0xff]
  %v86 = vld [vmem:[%s0 + $0x180] sm:$0xff]
  %v87 = vld [vmem:[%s0 + $0x188] sm:$0xff]
  %v88 = vld [vmem:[%s0 + $0x190] sm:$0xff]
  %v89 = vld [vmem:[%s0 + $0x198] sm:$0xff]
  %v90 = vld [vmem:[%s0 + $0x1a0] sm:$0xff]
  %v91 = vld [vmem:[%s0 + $0x1a8] sm:$0xff]
  %v92 = vld [vmem:[%s0 + $0x1b0] sm:$0xff]
  %v93 = vld [vmem:[%s0 + $0x1b8] sm:$0xff]
  %v94 = vld [vmem:[%s0 + $0x1c0] sm:$0xff]
  %v95 = vld [vmem:[%s0 + $0x1c8] sm:$0xff]
  %v96 = vld [vmem:[%s0 + $0x1d0] sm:$0xff]
  %v97 = vld [vmem:[%s0 + $0x1d8] sm:$0xff]
  %v98 = vld [vmem:[%s0 + $0x1e0] sm:$0xff]
  %v99 = vld [vmem:[%s0 + $0x1e8] sm:$0xff]
  %v100 = vld [vmem:[%s0 + $0x1f0] sm:$0xff]
  %v101 = vld [vmem:[%s0 + $0x1f8] sm:$0xff]
  %v102 = vld [vmem:[%s2] sm:$0xff]
  %v103 = vld [vmem:[%s2 + $0x8] sm:$0xff]
  %v104 = vld [vmem:[%s2 + $0x10] sm:$0xff]
  %v105 = vld [vmem:[%s2 + $0x18] sm:$0xff]
  %v106 = vld [vmem:[%s2 + $0x20] sm:$0xf]
  %v107 = vld [vmem:[%s3] sm:$0x1]
  %v109 = vlaneseq
  %v110 = vshrl.u32 %v109, 7
  %v111 = vsub.s32 0, %v110
  %v112 = vrot.slane %v107, %v111
  %vm114 = vcmask 293888
  %v116 = vsel %vm114, %v38, 0
  %v119 = vsel %vm114, %v39, 0
  %v122 = vsel %vm114, %v40, 0
  %v125 = vsel %vm114, %v41, 0
  %v128 = vsel %vm114, %v42, 0
  %v131 = vsel %vm114, %v43, 0
  %v134 = vsel %vm114, %v44, 0
  %v137 = vsel %vm114, %v45, 0
  %v140 = vsel %vm114, %v46, 0
  %v143 = vsel %vm114, %v47, 0
  %v146 = vsel %vm114, %v48, 0
  %v149 = vsel %vm114, %v49, 0
  %v152 = vsel %vm114, %v50, 0
  %v155 = vsel %vm114, %v51, 0
  %v158 = vsel %vm114, %v52, 0
  %v161 = vsel %vm114, %v53, 0
  %v164 = vsel %vm114, %v54, 0
  %v167 = vsel %vm114, %v55, 0
  %v170 = vsel %vm114, %v56, 0
  %v173 = vsel %vm114, %v57, 0
  %v176 = vsel %vm114, %v58, 0
  %v179 = vsel %vm114, %v59, 0
  %v182 = vsel %vm114, %v60, 0
  %v185 = vsel %vm114, %v61, 0
  %v188 = vsel %vm114, %v62, 0
  %v191 = vsel %vm114, %v63, 0
  %v194 = vsel %vm114, %v64, 0
  %v197 = vsel %vm114, %v65, 0
  %v200 = vsel %vm114, %v66, 0
  %v203 = vsel %vm114, %v67, 0
  %v206 = vsel %vm114, %v68, 0
  %v209 = vsel %vm114, %v69, 0
  %v212 = vsel %vm114, %v70, 0
  %v215 = vsel %vm114, %v71, 0
  %v218 = vsel %vm114, %v72, 0
  %v221 = vsel %vm114, %v73, 0
  %v224 = vsel %vm114, %v74, 0
  %v227 = vsel %vm114, %v75, 0
  %v230 = vsel %vm114, %v76, 0
  %v233 = vsel %vm114, %v77, 0
  %v236 = vsel %vm114, %v78, 0
  %v239 = vsel %vm114, %v79, 0
  %v242 = vsel %vm114, %v80, 0
  %v245 = vsel %vm114, %v81, 0
  %v248 = vsel %vm114, %v82, 0
  %v251 = vsel %vm114, %v83, 0
  %v254 = vsel %vm114, %v84, 0
  %v257 = vsel %vm114, %v85, 0
  %v260 = vsel %vm114, %v86, 0
  %v263 = vsel %vm114, %v87, 0
  %v266 = vsel %vm114, %v88, 0
  %v269 = vsel %vm114, %v89, 0
  %v272 = vsel %vm114, %v90, 0
  %v275 = vsel %vm114, %v91, 0
  %v278 = vsel %vm114, %v92, 0
  %v281 = vsel %vm114, %v93, 0
  %v284 = vsel %vm114, %v94, 0
  %v287 = vsel %vm114, %v95, 0
  %v290 = vsel %vm114, %v96, 0
  %v293 = vsel %vm114, %v97, 0
  %v296 = vsel %vm114, %v98, 0
  %v299 = vsel %vm114, %v99, 0
  %v302 = vsel %vm114, %v100, 0
  %v305 = vsel %vm114, %v101, 0
  %vm307 = vcmask 1043456
  %v309 = vsel %vm307, %v106, 0
  %311 = vmatprep.subr.mxu0 0.0
  %312 = vmatpush1.msra.mxu0 %v102
  %313 = vmatprep.subr.mxu0 0.0
  %314 = vmatpush1.msra.mxu0 %v103
  %315 = vmatprep.subr.mxu0 0.0
  %316 = vmatpush1.msra.mxu0 %v104
  %317 = vmatprep.subr.mxu0 0.0
  %318 = vmatpush1.msra.mxu0 %v105
  %319 = vmatprep.subr.mxu0 0.0
  %320 = vmatpush1.msra.mxu0 %v309
  %321 = vmatprep.subr.mxu0 0.0
  %322 = vmatpush1.msra.mxu0 0.0
  %323 = vmatprep.subr.mxu0 0.0
  %324 = vmatpush1.msra.mxu0 0.0
  %325 = vmatprep.subr.mxu0 0.0
  %326 = vmatpush1.msra.mxu0 0.0
  %327 = vmatprep.subr.mxu0 0.0
  %328 = vmatpush1.msra.mxu0 0.0
  %329 = vmatprep.subr.mxu0 0.0
  %330 = vmatpush1.msra.mxu0 0.0
  %331 = vmatprep.subr.mxu0 0.0
  %332 = vmatpush1.msra.mxu0 0.0
  %333 = vmatprep.subr.mxu0 0.0
  %334 = vmatpush1.msra.mxu0 0.0
  %335 = vmatprep.subr.mxu0 0.0
  %336 = vmatpush1.msra.mxu0 0.0
  %337 = vmatprep.subr.mxu0 0.0
  %338 = vmatpush1.msra.mxu0 0.0
  %339 = vmatprep.subr.mxu0 0.0
  %340 = vmatpush1.msra.mxu0 0.0
  %341 = vmatprep.subr.mxu0 0.0
  %342 = vmatpush1.msra.mxu0 0.0
  %343 = vmatprep.subr.mxu0 0.0
  %344 = vmatpush1.msra.mxu0 0.0
  %345 = vmatprep.subr.mxu0 0.0
  %346 = vmatpush1.msra.mxu0 0.0
  %347 = vmatprep.subr.mxu0 0.0
  %348 = vmatpush1.msra.mxu0 0.0
  %349 = vmatprep.subr.mxu0 0.0
  %350 = vmatpush1.msra.mxu0 0.0
  %351 = vmatprep.subr.mxu0 0.0
  %352 = vmatpush1.msra.mxu0 0.0
  %353 = vmatprep.subr.mxu0 0.0
  %354 = vmatpush1.msra.mxu0 0.0
  %355 = vmatprep.subr.mxu0 0.0
  %356 = vmatpush1.msra.mxu0 0.0
  %357 = vmatprep.subr.mxu0 0.0
  %358 = vmatpush1.msra.mxu0 0.0
  %359 = vmatprep.subr.mxu0 0.0
  %360 = vmatpush1.msra.mxu0 0.0
  %361 = vmatprep.subr.mxu0 0.0
  %362 = vmatpush1.msra.mxu0 0.0
  %363 = vmatprep.subr.mxu0 0.0
  %364 = vmatpush1.msra.mxu0 0.0
  %365 = vmatprep.subr.mxu0 0.0
  %366 = vmatpush1.msra.mxu0 0.0
  %367 = vmatprep.subr.mxu0 0.0
  %368 = vmatpush1.msra.mxu0 0.0
  %369 = vmatprep.subr.mxu0 0.0
  %370 = vmatpush1.msra.mxu0 0.0
  %371 = vmatprep.subr.mxu0 0.0
  %372 = vmatpush1.msra.mxu0 0.0
  %373 = vmatprep.subr.mxu0 0.0
  %374 = vmatpush1.msra.mxu0 0.0
  %375 = vmatprep.mubr.f32.mxu0 0.0
  %376 = vmatmul.mubr.f32.gmra.mrb[0].mxu0 %v116
  %v377 = vpop.f32.mrb[0].mxu0
  %v378 = vadd.f32 %v112, %v377
  %v379 = vpop.f32.mrb[0].mxu0
  %380 = vmatprep.mubr.f32.mxu0 0.0
  %381 = vmatmul.mubr.f32.gmra.mrb[0].mxu0 %v119
  %v382 = vpop.f32.mrb[0].mxu0
  %v383 = vadd.f32 %v112, %v382
  %v384 = vpop.f32.mrb[0].mxu0
  %385 = vmatprep.mubr.f32.mxu0 0.0
  %386 = vmatmul.mubr.f32.gmra.mrb[0].mxu0 %v122
  %v387 = vpop.f32.mrb[0].mxu0
  %v388 = vadd.f32 %v112, %v387
  %v389 = vpop.f32.mrb[0].mxu0
  %390 = vmatprep.mubr.f32.mxu0 0.0
  %391 = vmatmul.mubr.f32.gmra.mrb[0].mxu0 %v125
  %v392 = vpop.f32.mrb[0].mxu0
  %v393 = vadd.f32 %v112, %v392
  %v394 = vpop.f32.mrb[0].mxu0
  %395 = vmatprep.mubr.f32.mxu0 0.0
  %396 = vmatmul.mubr.f32.gmra.mrb[0].mxu0 %v128
  %v397 = vpop.f32.mrb[0].mxu0
  %v398 = vadd.f32 %v112, %v397
  %v399 = vpop.f32.mrb[0].mxu0
  %400 = vmatprep.mubr.f32.mxu0 0.0
  %401 = vmatmul.mubr.f32.gmra.mrb[0].mxu0 %v131
  %v402 = vpop.f32.mrb[0].mxu0
  %v403 = vadd.f32 %v112, %v402
  %v404 = vpop.f32.mrb[0].mxu0
  %405 = vmatprep.mubr.f32.mxu0 0.0
  %406 = vmatmul.mubr.f32.gmra.mrb[0].mxu0 %v134
  %v407 = vpop.f32.mrb[0].mxu0
  %v408 = vadd.f32 %v112, %v407
  %v409 = vpop.f32.mrb[0].mxu0
  %410 = vmatprep.mubr.f32.mxu0 0.0
  %411 = vmatmul.mubr.f32.gmra.mrb[0].mxu0 %v137
  %v412 = vpop.f32.mrb[0].mxu0
  %v413 = vadd.f32 %v112, %v412
  %v414 = vpop.f32.mrb[0].mxu0
  %415 = vmatprep.mubr.f32.mxu0 0.0
  %416 = vmatmul.mubr.f32.gmra.mrb[0].mxu0 %v140
  %v417 = vpop.f32.mrb[0].mxu0
  %v418 = vadd.f32 %v112, %v417
  %v419 = vpop.f32.mrb[0].mxu0
  %420 = vmatprep.mubr.f32.mxu0 0.0
  %421 = vmatmul.mubr.f32.gmra.mrb[0].mxu0 %v143
  %v422 = vpop.f32.mrb[0].mxu0
  %v423 = vadd.f32 %v112, %v422
  %v424 = vpop.f32.mrb[0].mxu0
  %425 = vmatprep.mubr.f32.mxu0 0.0
  %426 = vmatmul.mubr.f32.gmra.mrb[0].mxu0 %v146
  %v427 = vpop.f32.mrb[0].mxu0
  %v428 = vadd.f32 %v112, %v427
  %v429 = vpop.f32.mrb[0].mxu0
  %430 = vmatprep.mubr.f32.mxu0 0.0
  %431 = vmatmul.mubr.f32.gmra.mrb[0].mxu0 %v149
  %v432 = vpop.f32.mrb[0].mxu0
  %v433 = vadd.f32 %v112, %v432
  %v434 = vpop.f32.mrb[0].mxu0
  %435 = vmatprep.mubr.f32.mxu0 0.0
  %436 = vmatmul.mubr.f32.gmra.mrb[0].mxu0 %v152
  %v437 = vpop.f32.mrb[0].mxu0
  %v438 = vadd.f32 %v112, %v437
  %v439 = vpop.f32.mrb[0].mxu0
  %440 = vmatprep.mubr.f32.mxu0 0.0
  %441 = vmatmul.mubr.f32.gmra.mrb[0].mxu0 %v155
  %v442 = vpop.f32.mrb[0].mxu0
  %v443 = vadd.f32 %v112, %v442
  %v444 = vpop.f32.mrb[0].mxu0
  %445 = vmatprep.mubr.f32.mxu0 0.0
  %446 = vmatmul.mubr.f32.gmra.mrb[0].mxu0 %v158
  %v447 = vpop.f32.mrb[0].mxu0
  %v448 = vadd.f32 %v112, %v447
  %v449 = vpop.f32.mrb[0].mxu0
  %450 = vmatprep.mubr.f32.mxu0 0.0
  %451 = vmatmul.mubr.f32.gmra.mrb[0].mxu0 %v161
  %v452 = vpop.f32.mrb[0].mxu0
  %v453 = vadd.f32 %v112, %v452
  %v454 = vpop.f32.mrb[0].mxu0
  %455 = vmatprep.mubr.f32.mxu0 0.0
  %456 = vmatmul.mubr.f32.gmra.mrb[0].mxu0 %v164
  %v457 = vpop.f32.mrb[0].mxu0
  %v458 = vadd.f32 %v112, %v457
  %v459 = vpop.f32.mrb[0].mxu0
  %460 = vmatprep.mubr.f32.mxu0 0.0
  %461 = vmatmul.mubr.f32.gmra.mrb[0].mxu0 %v167
  %v462 = vpop.f32.mrb[0].mxu0
  %v463 = vadd.f32 %v112, %v462
  %v464 = vpop.f32.mrb[0].mxu0
  %465 = vmatprep.mubr.f32.mxu0 0.0
  %466 = vmatmul.mubr.f32.gmra.mrb[0].mxu0 %v170
  %v467 = vpop.f32.mrb[0].mxu0
  %v468 = vadd.f32 %v112, %v467
  %v469 = vpop.f32.mrb[0].mxu0
  %470 = vmatprep.mubr.f32.mxu0 0.0
  %471 = vmatmul.mubr.f32.gmra.mrb[0].mxu0 %v173
  %v472 = vpop.f32.mrb[0].mxu0
  %v473 = vadd.f32 %v112, %v472
  %v474 = vpop.f32.mrb[0].mxu0
  %475 = vmatprep.mubr.f32.mxu0 0.0
  %476 = vmatmul.mubr.f32.gmra.mrb[0].mxu0 %v176
  %v477 = vpop.f32.mrb[0].mxu0
  %v478 = vadd.f32 %v112, %v477
  %v479 = vpop.f32.mrb[0].mxu0
  %480 = vmatprep.mubr.f32.mxu0 0.0
  %481 = vmatmul.mubr.f32.gmra.mrb[0].mxu0 %v179
  %v482 = vpop.f32.mrb[0].mxu0
  %v483 = vadd.f32 %v112, %v482
  %v484 = vpop.f32.mrb[0].mxu0
  %485 = vmatprep.mubr.f32.mxu0 0.0
  %486 = vmatmul.mubr.f32.gmra.mrb[0].mxu0 %v182
  %v487 = vpop.f32.mrb[0].mxu0
  %v488 = vadd.f32 %v112, %v487
  %v489 = vpop.f32.mrb[0].mxu0
  %490 = vmatprep.mubr.f32.mxu0 0.0
  %491 = vmatmul.mubr.f32.gmra.mrb[0].mxu0 %v185
  %v492 = vpop.f32.mrb[0].mxu0
  %v493 = vadd.f32 %v112, %v492
  %v494 = vpop.f32.mrb[0].mxu0
  %495 = vmatprep.mubr.f32.mxu0 0.0
  %496 = vmatmul.mubr.f32.gmra.mrb[0].mxu0 %v188
  %v497 = vpop.f32.mrb[0].mxu0
  %v498 = vadd.f32 %v112, %v497
  %v499 = vpop.f32.mrb[0].mxu0
  %500 = vmatprep.mubr.f32.mxu0 0.0
  %501 = vmatmul.mubr.f32.gmra.mrb[0].mxu0 %v191
  %v502 = vpop.f32.mrb[0].mxu0
  %v503 = vadd.f32 %v112, %v502
  %v504 = vpop.f32.mrb[0].mxu0
  %505 = vmatprep.mubr.f32.mxu0 0.0
  %506 = vmatmul.mubr.f32.gmra.mrb[0].mxu0 %v194
  %v507 = vpop.f32.mrb[0].mxu0
  %v508 = vadd.f32 %v112, %v507
  %v509 = vpop.f32.mrb[0].mxu0
  %510 = vmatprep.mubr.f32.mxu0 0.0
  %511 = vmatmul.mubr.f32.gmra.mrb[0].mxu0 %v197
  %v512 = vpop.f32.mrb[0].mxu0
  %v513 = vadd.f32 %v112, %v512
  %v514 = vpop.f32.mrb[0].mxu0
  %515 = vmatprep.mubr.f32.mxu0 0.0
  %516 = vmatmul.mubr.f32.gmra.mrb[0].mxu0 %v200
  %v517 = vpop.f32.mrb[0].mxu0
  %v518 = vadd.f32 %v112, %v517
  %v519 = vpop.f32.mrb[0].mxu0
  %520 = vmatprep.mubr.f32.mxu0 0.0
  %521 = vmatmul.mubr.f32.gmra.mrb[0].mxu0 %v203
  %v522 = vpop.f32.mrb[0].mxu0
  %v523 = vadd.f32 %v112, %v522
  %v524 = vpop.f32.mrb[0].mxu0
  %525 = vmatprep.mubr.f32.mxu0 0.0
  %526 = vmatmul.mubr.f32.gmra.mrb[0].mxu0 %v206
  %v527 = vpop.f32.mrb[0].mxu0
  %v528 = vadd.f32 %v112, %v527
  %v529 = vpop.f32.mrb[0].mxu0
  %530 = vmatprep.mubr.f32.mxu0 0.0
  %531 = vmatmul.mubr.f32.gmra.mrb[0].mxu0 %v209
  %v532 = vpop.f32.mrb[0].mxu0
  %v533 = vadd.f32 %v112, %v532
  %v534 = vpop.f32.mrb[0].mxu0
  %535 = vmatprep.mubr.f32.mxu0 0.0
  %536 = vmatmul.mubr.f32.gmra.mrb[0].mxu0 %v212
  %v537 = vpop.f32.mrb[0].mxu0
  %v538 = vadd.f32 %v112, %v537
  %v539 = vpop.f32.mrb[0].mxu0
  %540 = vmatprep.mubr.f32.mxu0 0.0
  %541 = vmatmul.mubr.f32.gmra.mrb[0].mxu0 %v215
  %v542 = vpop.f32.mrb[0].mxu0
  %v543 = vadd.f32 %v112, %v542
  %v544 = vpop.f32.mrb[0].mxu0
  %545 = vmatprep.mubr.f32.mxu0 0.0
  %546 = vmatmul.mubr.f32.gmra.mrb[0].mxu0 %v218
  %v547 = vpop.f32.mrb[0].mxu0
  %v548 = vadd.f32 %v112, %v547
  %v549 = vpop.f32.mrb[0].mxu0
  %550 = vmatprep.mubr.f32.mxu0 0.0
  %551 = vmatmul.mubr.f32.gmra.mrb[0].mxu0 %v221
  %v552 = vpop.f32.mrb[0].mxu0
  %v553 = vadd.f32 %v112, %v552
  %v554 = vpop.f32.mrb[0].mxu0
  %555 = vmatprep.mubr.f32.mxu0 0.0
  %556 = vmatmul.mubr.f32.gmra.mrb[0].mxu0 %v224
  %v557 = vpop.f32.mrb[0].mxu0
  %v558 = vadd.f32 %v112, %v557
  %v559 = vpop.f32.mrb[0].mxu0
  %560 = vmatprep.mubr.f32.mxu0 0.0
  %561 = vmatmul.mubr.f32.gmra.mrb[0].mxu0 %v227
  %v562 = vpop.f32.mrb[0].mxu0
  %v563 = vadd.f32 %v112, %v562
  %v564 = vpop.f32.mrb[0].mxu0
  %565 = vmatprep.mubr.f32.mxu0 0.0
  %566 = vmatmul.mubr.f32.gmra.mrb[0].mxu0 %v230
  %v567 = vpop.f32.mrb[0].mxu0
  %v568 = vadd.f32 %v112, %v567
  %v569 = vpop.f32.mrb[0].mxu0
  %570 = vmatprep.mubr.f32.mxu0 0.0
  %571 = vmatmul.mubr.f32.gmra.mrb[0].mxu0 %v233
  %v572 = vpop.f32.mrb[0].mxu0
  %v573 = vadd.f32 %v112, %v572
  %v574 = vpop.f32.mrb[0].mxu0
  %575 = vmatprep.mubr.f32.mxu0 0.0
  %576 = vmatmul.mubr.f32.gmra.mrb[0].mxu0 %v236
  %v577 = vpop.f32.mrb[0].mxu0
  %v578 = vadd.f32 %v112, %v577
  %v579 = vpop.f32.mrb[0].mxu0
  %580 = vmatprep.mubr.f32.mxu0 0.0
  %581 = vmatmul.mubr.f32.gmra.mrb[0].mxu0 %v239
  %v582 = vpop.f32.mrb[0].mxu0
  %v583 = vadd.f32 %v112, %v582
  %v584 = vpop.f32.mrb[0].mxu0
  %585 = vmatprep.mubr.f32.mxu0 0.0
  %586 = vmatmul.mubr.f32.gmra.mrb[0].mxu0 %v242
  %v587 = vpop.f32.mrb[0].mxu0
  %v588 = vadd.f32 %v112, %v587
  %v589 = vpop.f32.mrb[0].mxu0
  %590 = vmatprep.mubr.f32.mxu0 0.0
  %591 = vmatmul.mubr.f32.gmra.mrb[0].mxu0 %v245
  %v592 = vpop.f32.mrb[0].mxu0
  %v593 = vadd.f32 %v112, %v592
  %v594 = vpop.f32.mrb[0].mxu0
  %595 = vmatprep.mubr.f32.mxu0 0.0
  %596 = vmatmul.mubr.f32.gmra.mrb[0].mxu0 %v248
  %v597 = vpop.f32.mrb[0].mxu0
  %v598 = vadd.f32 %v112, %v597
  %v599 = vpop.f32.mrb[0].mxu0
  %600 = vmatprep.mubr.f32.mxu0 0.0
  %601 = vmatmul.mubr.f32.gmra.mrb[0].mxu0 %v251
  %v602 = vpop.f32.mrb[0].mxu0
  %v603 = vadd.f32 %v112, %v602
  %v604 = vpop.f32.mrb[0].mxu0
  %605 = vmatprep.mubr.f32.mxu0 0.0
  %606 = vmatmul.mubr.f32.gmra.mrb[0].mxu0 %v254
  %v607 = vpop.f32.mrb[0].mxu0
  %v608 = vadd.f32 %v112, %v607
  %v609 = vpop.f32.mrb[0].mxu0
  %610 = vmatprep.mubr.f32.mxu0 0.0
  %611 = vmatmul.mubr.f32.gmra.mrb[0].mxu0 %v257
  %v612 = vpop.f32.mrb[0].mxu0
  %v613 = vadd.f32 %v112, %v612
  %v614 = vpop.f32.mrb[0].mxu0
  %615 = vmatprep.mubr.f32.mxu0 0.0
  %616 = vmatmul.mubr.f32.gmra.mrb[0].mxu0 %v260
  %v617 = vpop.f32.mrb[0].mxu0
  %v618 = vadd.f32 %v112, %v617
  %v619 = vpop.f32.mrb[0].mxu0
  %620 = vmatprep.mubr.f32.mxu0 0.0
  %621 = vmatmul.mubr.f32.gmra.mrb[0].mxu0 %v263
  %v622 = vpop.f32.mrb[0].mxu0
  %v623 = vadd.f32 %v112, %v622
  %v624 = vpop.f32.mrb[0].mxu0
  %625 = vmatprep.mubr.f32.mxu0 0.0
  %626 = vmatmul.mubr.f32.gmra.mrb[0].mxu0 %v266
  %v627 = vpop.f32.mrb[0].mxu0
  %v628 = vadd.f32 %v112, %v627
  %v629 = vpop.f32.mrb[0].mxu0
  %630 = vmatprep.mubr.f32.mxu0 0.0
  %631 = vmatmul.mubr.f32.gmra.mrb[0].mxu0 %v269
  %v632 = vpop.f32.mrb[0].mxu0
  %v633 = vadd.f32 %v112, %v632
  %v634 = vpop.f32.mrb[0].mxu0
  %635 = vmatprep.mubr.f32.mxu0 0.0
  %636 = vmatmul.mubr.f32.gmra.mrb[0].mxu0 %v272
  %v637 = vpop.f32.mrb[0].mxu0
  %v638 = vadd.f32 %v112, %v637
  %v639 = vpop.f32.mrb[0].mxu0
  %640 = vmatprep.mubr.f32.mxu0 0.0
  %641 = vmatmul.mubr.f32.gmra.mrb[0].mxu0 %v275
  %v642 = vpop.f32.mrb[0].mxu0
  %v643 = vadd.f32 %v112, %v642
  %v644 = vpop.f32.mrb[0].mxu0
  %645 = vmatprep.mubr.f32.mxu0 0.0
  %646 = vmatmul.mubr.f32.gmra.mrb[0].mxu0 %v278
  %v647 = vpop.f32.mrb[0].mxu0
  %v648 = vadd.f32 %v112, %v647
  %v649 = vpop.f32.mrb[0].mxu0
  %650 = vmatprep.mubr.f32.mxu0 0.0
  %651 = vmatmul.mubr.f32.gmra.mrb[0].mxu0 %v281
  %v652 = vpop.f32.mrb[0].mxu0
  %v653 = vadd.f32 %v112, %v652
  %v654 = vpop.f32.mrb[0].mxu0
  %655 = vmatprep.mubr.f32.mxu0 0.0
  %656 = vmatmul.mubr.f32.gmra.mrb[0].mxu0 %v284
  %v657 = vpop.f32.mrb[0].mxu0
  %v658 = vadd.f32 %v112, %v657
  %v659 = vpop.f32.mrb[0].mxu0
  %660 = vmatprep.mubr.f32.mxu0 0.0
  %661 = vmatmul.mubr.f32.gmra.mrb[0].mxu0 %v287
  %v662 = vpop.f32.mrb[0].mxu0
  %v663 = vadd.f32 %v112, %v662
  %v664 = vpop.f32.mrb[0].mxu0
  %665 = vmatprep.mubr.f32.mxu0 0.0
  %666 = vmatmul.mubr.f32.gmra.mrb[0].mxu0 %v290
  %v667 = vpop.f32.mrb[0].mxu0
  %v668 = vadd.f32 %v112, %v667
  %v669 = vpop.f32.mrb[0].mxu0
  %670 = vmatprep.mubr.f32.mxu0 0.0
  %671 = vmatmul.mubr.f32.gmra.mrb[0].mxu0 %v293
  %v672 = vpop.f32.mrb[0].mxu0
  %v673 = vadd.f32 %v112, %v672
  %v674 = vpop.f32.mrb[0].mxu0
  %675 = vmatprep.mubr.f32.mxu0 0.0
  %676 = vmatmul.mubr.f32.gmra.mrb[0].mxu0 %v296
  %v677 = vpop.f32.mrb[0].mxu0
  %v678 = vadd.f32 %v112, %v677
  %v679 = vpop.f32.mrb[0].mxu0
  %680 = vmatprep.mubr.f32.mxu0 0.0
  %681 = vmatmul.mubr.f32.gmra.mrb[0].mxu0 %v299
  %v682 = vpop.f32.mrb[0].mxu0
  %v683 = vadd.f32 %v112, %v682
  %v684 = vpop.f32.mrb[0].mxu0
  %685 = vmatprep.mubr.f32.mxu0 0.0
  %686 = vmatmul.mubr.f32.gmra.mrb[0].mxu0 %v302
  %v687 = vpop.f32.mrb[0].mxu0
  %v688 = vadd.f32 %v112, %v687
  %v689 = vpop.f32.mrb[0].mxu0
  %690 = vmatprep.mubr.f32.mxu0 0.0
  %691 = vmatmul.mubr.f32.gmra.mrb[0].mxu0 %v305
  %v692 = vpop.f32.mrb[0].mxu0
  %v693 = vadd.f32 %v112, %v692
  %v694 = vpop.f32.mrb[0].mxu0
  %695 = vdwg.mxu0
  %v696 = vmax.f32 %v378, 0.0
  %v697 = vmax.f32 %v383, 0.0
  %v698 = vmax.f32 %v388, 0.0
  %v699 = vmax.f32 %v393, 0.0
  %v700 = vmax.f32 %v398, 0.0
  %v701 = vmax.f32 %v403, 0.0
  %v702 = vmax.f32 %v408, 0.0
  %v703 = vmax.f32 %v413, 0.0
  %v704 = vmax.f32 %v418, 0.0
  %v705 = vmax.f32 %v423, 0.0
  %v706 = vmax.f32 %v428, 0.0
  %v707 = vmax.f32 %v433, 0.0
  %v708 = vmax.f32 %v438, 0.0
  %v709 = vmax.f32 %v443, 0.0
  %v710 = vmax.f32 %v448, 0.0
  %v711 = vmax.f32 %v453, 0.0
  %v712 = vmax.f32 %v458, 0.0
  %v713 = vmax.f32 %v463, 0.0
  %v714 = vmax.f32 %v468, 0.0
  %v715 = vmax.f32 %v473, 0.0
  %v716 = vmax.f32 %v478, 0.0
  %v717 = vmax.f32 %v483, 0.0
  %v718 = vmax.f32 %v488, 0.0
  %v719 = vmax.f32 %v493, 0.0
  %v720 = vmax.f32 %v498, 0.0
  %v721 = vmax.f32 %v503, 0.0
  %v722 = vmax.f32 %v508, 0.0
  %v723 = vmax.f32 %v513, 0.0
  %v724 = vmax.f32 %v518, 0.0
  %v725 = vmax.f32 %v523, 0.0
  %v726 = vmax.f32 %v528, 0.0
  %v727 = vmax.f32 %v533, 0.0
  %v728 = vmax.f32 %v538, 0.0
  %v729 = vmax.f32 %v543, 0.0
  %v730 = vmax.f32 %v548, 0.0
  %v731 = vmax.f32 %v553, 0.0
  %v732 = vmax.f32 %v558, 0.0
  %v733 = vmax.f32 %v563, 0.0
  %v734 = vmax.f32 %v568, 0.0
  %v735 = vmax.f32 %v573, 0.0
  %v736 = vmax.f32 %v578, 0.0
  %v737 = vmax.f32 %v583, 0.0
  %v738 = vmax.f32 %v588, 0.0
  %v739 = vmax.f32 %v593, 0.0
  %v740 = vmax.f32 %v598, 0.0
  %v741 = vmax.f32 %v603, 0.0
  %v742 = vmax.f32 %v608, 0.0
  %v743 = vmax.f32 %v613, 0.0
  %v744 = vmax.f32 %v618, 0.0
  %v745 = vmax.f32 %v623, 0.0
  %v746 = vmax.f32 %v628, 0.0
  %v747 = vmax.f32 %v633, 0.0
  %v748 = vmax.f32 %v638, 0.0
  %v749 = vmax.f32 %v643, 0.0
  %v750 = vmax.f32 %v648, 0.0
  %v751 = vmax.f32 %v653, 0.0
  %v752 = vmax.f32 %v658, 0.0
  %v753 = vmax.f32 %v663, 0.0
  %v754 = vmax.f32 %v668, 0.0
  %v755 = vmax.f32 %v673, 0.0
  %v756 = vmax.f32 %v678, 0.0
  %v757 = vmax.f32 %v683, 0.0
  %v758 = vmax.f32 %v688, 0.0
  %v759 = vmax.f32 %v693, 0.0
  %v760 = vld [vmem:[%s1] sm:$0xff]
  %v761 = vld [vmem:[%s1 + $0x8] sm:$0xff]
  %v762 = vld [vmem:[%s1 + $0x10] sm:$0xff]
  %v763 = vld [vmem:[%s1 + $0x18] sm:$0xff]
  %v764 = vld [vmem:[%s1 + $0x20] sm:$0xff]
  %v765 = vld [vmem:[%s1 + $0x28] sm:$0xff]
  %v766 = vld [vmem:[%s1 + $0x30] sm:$0xff]
  %v767 = vld [vmem:[%s1 + $0x38] sm:$0xff]
  %v768 = vld [vmem:[%s1 + $0x40] sm:$0xff]
  %v769 = vld [vmem:[%s1 + $0x48] sm:$0xff]
  %v770 = vld [vmem:[%s1 + $0x50] sm:$0xff]
  %v771 = vld [vmem:[%s1 + $0x58] sm:$0xff]
  %v772 = vld [vmem:[%s1 + $0x60] sm:$0xff]
  %v773 = vld [vmem:[%s1 + $0x68] sm:$0xff]
  %v774 = vld [vmem:[%s1 + $0x70] sm:$0xff]
  %v775 = vld [vmem:[%s1 + $0x78] sm:$0xff]
  %776 = vmatprep.subr.mxu0 0.0
  %777 = vmatpush1.msra.mxu0 %v696
  %778 = vmatprep.subr.mxu0 0.0
  %779 = vmatpush1.msra.mxu0 %v697
  %780 = vmatprep.subr.mxu0 0.0
  %781 = vmatpush1.msra.mxu0 %v698
  %782 = vmatprep.subr.mxu0 0.0
  %783 = vmatpush1.msra.mxu0 %v699
  %784 = vmatprep.subr.mxu0 0.0
  %785 = vmatpush1.msra.mxu0 %v700
  %786 = vmatprep.subr.mxu0 0.0
  %787 = vmatpush1.msra.mxu0 %v701
  %788 = vmatprep.subr.mxu0 0.0
  %789 = vmatpush1.msra.mxu0 %v702
  %790 = vmatprep.subr.mxu0 0.0
  %791 = vmatpush1.msra.mxu0 %v703
  %792 = vmatprep.subr.mxu0 0.0
  %793 = vmatpush1.msra.mxu0 %v704
  %794 = vmatprep.subr.mxu0 0.0
  %795 = vmatpush1.msra.mxu0 %v705
  %796 = vmatprep.subr.mxu0 0.0
  %797 = vmatpush1.msra.mxu0 %v706
  %798 = vmatprep.subr.mxu0 0.0
  %799 = vmatpush1.msra.mxu0 %v707
  %800 = vmatprep.subr.mxu0 0.0
  %801 = vmatpush1.msra.mxu0 %v708
  %802 = vmatprep.subr.mxu0 0.0
  %803 = vmatpush1.msra.mxu0 %v709
  %804 = vmatprep.subr.mxu0 0.0
  %805 = vmatpush1.msra.mxu0 %v710
  %806 = vmatprep.subr.mxu0 0.0
  %807 = vmatpush1.msra.mxu0 %v711
  %808 = vmatprep.subr.mxu0 0.0
  %809 = vmatpush1.msra.mxu0 %v712
  %810 = vmatprep.subr.mxu0 0.0
  %811 = vmatpush1.msra.mxu0 %v713
  %812 = vmatprep.subr.mxu0 0.0
  %813 = vmatpush1.msra.mxu0 %v714
  %814 = vmatprep.subr.mxu0 0.0
  %815 = vmatpush1.msra.mxu0 %v715
  %816 = vmatprep.subr.mxu0 0.0
  %817 = vmatpush1.msra.mxu0 %v716
  %818 = vmatprep.subr.mxu0 0.0
  %819 = vmatpush1.msra.mxu0 %v717
  %820 = vmatprep.subr.mxu0 0.0
  %821 = vmatpush1.msra.mxu0 %v718
  %822 = vmatprep.subr.mxu0 0.0
  %823 = vmatpush1.msra.mxu0 %v719
  %824 = vmatprep.subr.mxu0 0.0
  %825 = vmatpush1.msra.mxu0 %v720
  %826 = vmatprep.subr.mxu0 0.0
  %827 = vmatpush1.msra.mxu0 %v721
  %828 = vmatprep.subr.mxu0 0.0
  %829 = vmatpush1.msra.mxu0 %v722
  %830 = vmatprep.subr.mxu0 0.0
  %831 = vmatpush1.msra.mxu0 %v723
  %832 = vmatprep.subr.mxu0 0.0
  %833 = vmatpush1.msra.mxu0 %v724
  %834 = vmatprep.subr.mxu0 0.0
  %835 = vmatpush1.msra.mxu0 %v725
  %836 = vmatprep.subr.mxu0 0.0
  %837 = vmatpush1.msra.mxu0 %v726
  %838 = vmatprep.subr.mxu0 0.0
  %839 = vmatpush1.msra.mxu0 %v727
  %840 = vmatprep.mubr.f32.mxu0 %v761
  %841 = vmatmul.mubr.f32.gmra.mrb[0].mxu0 %v760
  %v842 = vpop.f32.mrb[0].mxu0
  %v843 = vadd.f32 0.0, %v842
  %v844 = vpop.f32.mrb[0].mxu0
  %845 = vmatprep.mubr.f32.mxu0 %v765
  %846 = vmatmul.mubr.f32.gmra.mrb[0].mxu0 %v764
  %v847 = vpop.f32.mrb[0].mxu0
  %v848 = vadd.f32 0.0, %v847
  %v849 = vpop.f32.mrb[0].mxu0
  %850 = vmatprep.mubr.f32.mxu0 %v769
  %851 = vmatmul.mubr.f32.gmra.mrb[0].mxu0 %v768
  %v852 = vpop.f32.mrb[0].mxu0
  %v853 = vadd.f32 0.0, %v852
  %v854 = vpop.f32.mrb[0].mxu0
  %855 = vmatprep.mubr.f32.mxu0 %v773
  %856 = vmatmul.mubr.f32.gmra.mrb[0].mxu0 %v772
  %v857 = vpop.f32.mrb[0].mxu0
  %v858 = vadd.f32 0.0, %v857
  %v859 = vpop.f32.mrb[0].mxu0
  %860 = vdwg.mxu0
  %861 = vmatprep.subr.mxu0 0.0
  %862 = vmatpush1.msra.mxu0 %v728
  %863 = vmatprep.subr.mxu0 0.0
  %864 = vmatpush1.msra.mxu0 %v729
  %865 = vmatprep.subr.mxu0 0.0
  %866 = vmatpush1.msra.mxu0 %v730
  %867 = vmatprep.subr.mxu0 0.0
  %868 = vmatpush1.msra.mxu0 %v731
  %869 = vmatprep.subr.mxu0 0.0
  %870 = vmatpush1.msra.mxu0 %v732
  %871 = vmatprep.subr.mxu0 0.0
  %872 = vmatpush1.msra.mxu0 %v733
  %873 = vmatprep.subr.mxu0 0.0
  %874 = vmatpush1.msra.mxu0 %v734
  %875 = vmatprep.subr.mxu0 0.0
  %876 = vmatpush1.msra.mxu0 %v735
  %877 = vmatprep.subr.mxu0 0.0
  %878 = vmatpush1.msra.mxu0 %v736
  %879 = vmatprep.subr.mxu0 0.0
  %880 = vmatpush1.msra.mxu0 %v737
  %881 = vmatprep.subr.mxu0 0.0
  %882 = vmatpush1.msra.mxu0 %v738
  %883 = vmatprep.subr.mxu0 0.0
  %884 = vmatpush1.msra.mxu0 %v739
  %885 = vmatprep.subr.mxu0 0.0
  %886 = vmatpush1.msra.mxu0 %v740
  %887 = vmatprep.subr.mxu0 0.0
  %888 = vmatpush1.msra.mxu0 %v741
  %889 = vmatprep.subr.mxu0 0.0
  %890 = vmatpush1.msra.mxu0 %v742
  %891 = vmatprep.subr.mxu0 0.0
  %892 = vmatpush1.msra.mxu0 %v743
  %893 = vmatprep.subr.mxu0 0.0
  %894 = vmatpush1.msra.mxu0 %v744
  %895 = vmatprep.subr.mxu0 0.0
  %896 = vmatpush1.msra.mxu0 %v745
  %897 = vmatprep.subr.mxu0 0.0
  %898 = vmatpush1.msra.mxu0 %v746
  %899 = vmatprep.subr.mxu0 0.0
  %900 = vmatpush1.msra.mxu0 %v747
  %901 = vmatprep.subr.mxu0 0.0
  %902 = vmatpush1.msra.mxu0 %v748
  %903 = vmatprep.subr.mxu0 0.0
  %904 = vmatpush1.msra.mxu0 %v749
  %905 = vmatprep.subr.mxu0 0.0
  %906 = vmatpush1.msra.mxu0 %v750
  %907 = vmatprep.subr.mxu0 0.0
  %908 = vmatpush1.msra.mxu0 %v751
  %909 = vmatprep.subr.mxu0 0.0
  %910 = vmatpush1.msra.mxu0 %v752
  %911 = vmatprep.subr.mxu0 0.0
  %912 = vmatpush1.msra.mxu0 %v753
  %913 = vmatprep.subr.mxu0 0.0
  %914 = vmatpush1.msra.mxu0 %v754
  %915 = vmatprep.subr.mxu0 0.0
  %916 = vmatpush1.msra.mxu0 %v755
  %917 = vmatprep.subr.mxu0 0.0
  %918 = vmatpush1.msra.mxu0 %v756
  %919 = vmatprep.subr.mxu0 0.0
  %920 = vmatpush1.msra.mxu0 %v757
  %921 = vmatprep.subr.mxu0 0.0
  %922 = vmatpush1.msra.mxu0 %v758
  %923 = vmatprep.subr.mxu0 0.0
  %924 = vmatpush1.msra.mxu0 %v759
  %925 = vmatprep.mubr.f32.mxu0 %v763
  %926 = vmatmul.mubr.f32.gmra.mrb[0].mxu0 %v762
  %v927 = vpop.f32.mrb[0].mxu0
  %v928 = vadd.f32 %v843, %v927
  %v929 = vpop.f32.mrb[0].mxu0
  %930 = vmatprep.mubr.f32.mxu0 %v767
  %931 = vmatmul.mubr.f32.gmra.mrb[0].mxu0 %v766
  %v932 = vpop.f32.mrb[0].mxu0
  %v933 = vadd.f32 %v848, %v932
  %v934 = vpop.f32.mrb[0].mxu0
  %935 = vmatprep.mubr.f32.mxu0 %v771
  %936 = vmatmul.mubr.f32.gmra.mrb[0].mxu0 %v770
  %v937 = vpop.f32.mrb[0].mxu0
  %v938 = vadd.f32 %v853, %v937
  %v939 = vpop.f32.mrb[0].mxu0
  %940 = vmatprep.mubr.f32.mxu0 %v775
  %941 = vmatmul.mubr.f32.gmra.mrb[0].mxu0 %v774
  %v942 = vpop.f32.mrb[0].mxu0
  %v943 = vadd.f32 %v858, %v942
  %v944 = vpop.f32.mrb[0].mxu0
  %945 = vdwg.mxu0
  %v946 = vld [vmem:[%s4] sm:$0xff]
  %v947 = vld [vmem:[%s4 + $0x8] sm:$0xff]
  %v948 = vld [vmem:[%s5] sm:$0x1]
  %v950 = vlaneseq
  %v951 = vshrl.u32 %v950, 7
  %v952 = vsub.s32 0, %v951
  %v953 = vrot.slane %v948, %v952
  %vm955 = vcmask 130048
  %v957 = vsel %vm955, %v928, 0
  %v960 = vsel %vm955, %v933, 0
  %v963 = vsel %vm955, %v938, 0
  %v966 = vsel %vm955, %v943, 0
  %968 = vmatprep.subr.mxu0 0.0
  %969 = vmatpush1.msra.mxu0 %v946
  %970 = vmatprep.subr.mxu0 0.0
  %971 = vmatpush1.msra.mxu0 %v947
  %972 = vmatprep.subr.mxu0 0.0
  %973 = vmatpush1.msra.mxu0 0.0
  %974 = vmatprep.subr.mxu0 0.0
  %975 = vmatpush1.msra.mxu0 0.0
  %976 = vmatprep.subr.mxu0 0.0
  %977 = vmatpush1.msra.mxu0 0.0
  %978 = vmatprep.subr.mxu0 0.0
  %979 = vmatpush1.msra.mxu0 0.0
  %980 = vmatprep.subr.mxu0 0.0
  %981 = vmatpush1.msra.mxu0 0.0
  %982 = vmatprep.subr.mxu0 0.0
  %983 = vmatpush1.msra.mxu0 0.0
  %984 = vmatprep.subr.mxu0 0.0
  %985 = vmatpush1.msra.mxu0 0.0
  %986 = vmatprep.subr.mxu0 0.0
  %987 = vmatpush1.msra.mxu0 0.0
  %988 = vmatprep.subr.mxu0 0.0
  %989 = vmatpush1.msra.mxu0 0.0
  %990 = vmatprep.subr.mxu0 0.0
  %991 = vmatpush1.msra.mxu0 0.0
  %992 = vmatprep.subr.mxu0 0.0
  %993 = vmatpush1.msra.mxu0 0.0
  %994 = vmatprep.subr.mxu0 0.0
  %995 = vmatpush1.msra.mxu0 0.0
  %996 = vmatprep.subr.mxu0 0.0
  %997 = vmatpush1.msra.mxu0 0.0
  %998 = vmatprep.subr.mxu0 0.0
  %999 = vmatpush1.msra.mxu0 0.0
  %1000 = vmatprep.subr.mxu0 0.0
  %1001 = vmatpush1.msra.mxu0 0.0
  %1002 = vmatprep.subr.mxu0 0.0
  %1003 = vmatpush1.msra.mxu0 0.0
  %1004 = vmatprep.subr.mxu0 0.0
  %1005 = vmatpush1.msra.mxu0 0.0
  %1006 = vmatprep.subr.mxu0 0.0
  %1007 = vmatpush1.msra.mxu0 0.0
  %1008 = vmatprep.subr.mxu0 0.0
  %1009 = vmatpush1.msra.mxu0 0.0
  %1010 = vmatprep.subr.mxu0 0.0
  %1011 = vmatpush1.msra.mxu0 0.0
  %1012 = vmatprep.subr.mxu0 0.0
  %1013 = vmatpush1.msra.mxu0 0.0
  %1014 = vmatprep.subr.mxu0 0.0
  %1015 = vmatpush1.msra.mxu0 0.0
  %1016 = vmatprep.subr.mxu0 0.0
  %1017 = vmatpush1.msra.mxu0 0.0
  %1018 = vmatprep.subr.mxu0 0.0
  %1019 = vmatpush1.msra.mxu0 0.0
  %1020 = vmatprep.subr.mxu0 0.0
  %1021 = vmatpush1.msra.mxu0 0.0
  %1022 = vmatprep.subr.mxu0 0.0
  %1023 = vmatpush1.msra.mxu0 0.0
  %1024 = vmatprep.subr.mxu0 0.0
  %1025 = vmatpush1.msra.mxu0 0.0
  %1026 = vmatprep.subr.mxu0 0.0
  %1027 = vmatpush1.msra.mxu0 0.0
  %1028 = vmatprep.subr.mxu0 0.0
  %1029 = vmatpush1.msra.mxu0 0.0
  %1030 = vmatprep.subr.mxu0 0.0
  %1031 = vmatpush1.msra.mxu0 0.0
  %1032 = vmatprep.mubr.f32.mxu0 0.0
  %1033 = vmatmul.mubr.f32.gmra.mrb[0].mxu0 %v957
  %v1034 = vpop.f32.mrb[0].mxu0
  %v1035 = vadd.f32 %v953, %v1034
  %v1036 = vpop.f32.mrb[0].mxu0
  %1037 = vmatprep.mubr.f32.mxu0 0.0
  %1038 = vmatmul.mubr.f32.gmra.mrb[0].mxu0 %v960
  %v1039 = vpop.f32.mrb[0].mxu0
  %v1040 = vadd.f32 %v953, %v1039
  %v1041 = vpop.f32.mrb[0].mxu0
  %1042 = vmatprep.mubr.f32.mxu0 0.0
  %1043 = vmatmul.mubr.f32.gmra.mrb[0].mxu0 %v963
  %v1044 = vpop.f32.mrb[0].mxu0
  %v1045 = vadd.f32 %v953, %v1044
  %v1046 = vpop.f32.mrb[0].mxu0
  %1047 = vmatprep.mubr.f32.mxu0 0.0
  %1048 = vmatmul.mubr.f32.gmra.mrb[0].mxu0 %v966
  %v1049 = vpop.f32.mrb[0].mxu0
  %v1050 = vadd.f32 %v953, %v1049
  %v1051 = vpop.f32.mrb[0].mxu0
  %1052 = vdwg.mxu0
  %v1053 = vmax.f32 %v1035, 0.0
  %v1054 = vmax.f32 %v1040, 0.0
  %v1055 = vmax.f32 %v1045, 0.0
  %v1056 = vmax.f32 %v1050, 0.0
  %v1057 = vld [vmem:[%s6] sm:$0xff]
  %v1058 = vld [vmem:[%s6 + $0x8] sm:$0xff]
  %v1059 = vld [vmem:[%s6 + $0x10] sm:$0xff]
  %v1060 = vld [vmem:[%s6 + $0x18] sm:$0xff]
  %v1061 = vld [vmem:[%s8] sm:$0x1]
  %v1063 = vlaneseq
  %v1064 = vshrl.u32 %v1063, 7
  %v1065 = vsub.s32 0, %v1064
  %v1066 = vrot.slane %v1061, %v1065
  %vm1068 = vcmask 261120
  %v1070 = vsel %vm1068, %v1053, 0
  %v1073 = vsel %vm1068, %v1054, 0
  %v1076 = vsel %vm1068, %v1055, 0
  %v1079 = vsel %vm1068, %v1056, 0
  %1081 = vmatprep.subr.mxu0 0.0
  %1082 = vmatpush1.msra.mxu0 %v1057
  %1083 = vmatprep.subr.mxu0 0.0
  %1084 = vmatpush1.msra.mxu0 %v1058
  %1085 = vmatprep.subr.mxu0 0.0
  %1086 = vmatpush1.msra.mxu0 %v1059
  %1087 = vmatprep.subr.mxu0 0.0
  %1088 = vmatpush1.msra.mxu0 %v1060
  %1089 = vmatprep.subr.mxu0 0.0
  %1090 = vmatpush1.msra.mxu0 0.0
  %1091 = vmatprep.subr.mxu0 0.0
  %1092 = vmatpush1.msra.mxu0 0.0
  %1093 = vmatprep.subr.mxu0 0.0
  %1094 = vmatpush1.msra.mxu0 0.0
  %1095 = vmatprep.subr.mxu0 0.0
  %1096 = vmatpush1.msra.mxu0 0.0
  %1097 = vmatprep.subr.mxu0 0.0
  %1098 = vmatpush1.msra.mxu0 0.0
  %1099 = vmatprep.subr.mxu0 0.0
  %1100 = vmatpush1.msra.mxu0 0.0
  %1101 = vmatprep.subr.mxu0 0.0
  %1102 = vmatpush1.msra.mxu0 0.0
  %1103 = vmatprep.subr.mxu0 0.0
  %1104 = vmatpush1.msra.mxu0 0.0
  %1105 = vmatprep.subr.mxu0 0.0
  %1106 = vmatpush1.msra.mxu0 0.0
  %1107 = vmatprep.subr.mxu0 0.0
  %1108 = vmatpush1.msra.mxu0 0.0
  %1109 = vmatprep.subr.mxu0 0.0
  %1110 = vmatpush1.msra.mxu0 0.0
  %1111 = vmatprep.subr.mxu0 0.0
  %1112 = vmatpush1.msra.mxu0 0.0
  %1113 = vmatprep.subr.mxu0 0.0
  %1114 = vmatpush1.msra.mxu0 0.0
  %1115 = vmatprep.subr.mxu0 0.0
  %1116 = vmatpush1.msra.mxu0 0.0
  %1117 = vmatprep.subr.mxu0 0.0
  %1118 = vmatpush1.msra.mxu0 0.0
  %1119 = vmatprep.subr.mxu0 0.0
  %1120 = vmatpush1.msra.mxu0 0.0
  %1121 = vmatprep.subr.mxu0 0.0
  %1122 = vmatpush1.msra.mxu0 0.0
  %1123 = vmatprep.subr.mxu0 0.0
  %1124 = vmatpush1.msra.mxu0 0.0
  %1125 = vmatprep.subr.mxu0 0.0
  %1126 = vmatpush1.msra.mxu0 0.0
  %1127 = vmatprep.subr.mxu0 0.0
  %1128 = vmatpush1.msra.mxu0 0.0
  %1129 = vmatprep.subr.mxu0 0.0
  %1130 = vmatpush1.msra.mxu0 0.0
  %1131 = vmatprep.subr.mxu0 0.0
  %1132 = vmatpush1.msra.mxu0 0.0
  %1133 = vmatprep.subr.mxu0 0.0
  %1134 = vmatpush1.msra.mxu0 0.0
  %1135 = vmatprep.subr.mxu0 0.0
  %1136 = vmatpush1.msra.mxu0 0.0
  %1137 = vmatprep.subr.mxu0 0.0
  %1138 = vmatpush1.msra.mxu0 0.0
  %1139 = vmatprep.subr.mxu0 0.0
  %1140 = vmatpush1.msra.mxu0 0.0
  %1141 = vmatprep.subr.mxu0 0.0
  %1142 = vmatpush1.msra.mxu0 0.0
  %1143 = vmatprep.subr.mxu0 0.0
  %1144 = vmatpush1.msra.mxu0 0.0
  %1145 = vmatprep.mubr.f32.mxu0 0.0
  %1146 = vmatmul.mubr.f32.gmra.mrb[0].mxu0 %v1070
  %v1147 = vpop.f32.mrb[0].mxu0
  %v1148 = vadd.f32 %v1066, %v1147
  %v1149 = vpop.f32.mrb[0].mxu0
  %1150 = vmatprep.mubr.f32.mxu0 0.0
  %1151 = vmatmul.mubr.f32.gmra.mrb[0].mxu0 %v1073
  %v1152 = vpop.f32.mrb[0].mxu0
  %v1153 = vadd.f32 %v1066, %v1152
  %v1154 = vpop.f32.mrb[0].mxu0
  %1155 = vmatprep.mubr.f32.mxu0 0.0
  %1156 = vmatmul.mubr.f32.gmra.mrb[0].mxu0 %v1076
  %v1157 = vpop.f32.mrb[0].mxu0
  %v1158 = vadd.f32 %v1066, %v1157
  %v1159 = vpop.f32.mrb[0].mxu0
  %1160 = vmatprep.mubr.f32.mxu0 0.0
  %1161 = vmatmul.mubr.f32.gmra.mrb[0].mxu0 %v1079
  %v1162 = vpop.f32.mrb[0].mxu0
  %v1163 = vadd.f32 %v1066, %v1162
  %v1164 = vpop.f32.mrb[0].mxu0
  %1165 = vdwg.mxu0
  %v1166 = vld [vmem:[%s7] sm:$0xff]
  %v1167 = vld [vmem:[%s7 + $0x8] sm:$0xff]
  %v1168 = vld [vmem:[%s7 + $0x10] sm:$0xff]
  %v1169 = vld [vmem:[%s7 + $0x18] sm:$0xff]
  %v1171 = vsel %vm1068, 0.0, 0
  %1173 = vmatprep.subr.mxu0 0.0
  %1174 = vmatpush1.msra.mxu0 %v1166
  %1175 = vmatprep.subr.mxu0 0.0
  %1176 = vmatpush1.msra.mxu0 %v1167
  %1177 = vmatprep.subr.mxu0 0.0
  %1178 = vmatpush1.msra.mxu0 %v1168
  %1179 = vmatprep.subr.mxu0 0.0
  %1180 = vmatpush1.msra.mxu0 %v1169
  %1181 = vmatprep.subr.mxu0 0.0
  %1182 = vmatpush1.msra.mxu0 0.0
  %1183 = vmatprep.subr.mxu0 0.0
  %1184 = vmatpush1.msra.mxu0 0.0
  %1185 = vmatprep.subr.mxu0 0.0
  %1186 = vmatpush1.msra.mxu0 0.0
  %1187 = vmatprep.subr.mxu0 0.0
  %1188 = vmatpush1.msra.mxu0 0.0
  %1189 = vmatprep.subr.mxu0 0.0
  %1190 = vmatpush1.msra.mxu0 0.0
  %1191 = vmatprep.subr.mxu0 0.0
  %1192 = vmatpush1.msra.mxu0 0.0
  %1193 = vmatprep.subr.mxu0 0.0
  %1194 = vmatpush1.msra.mxu0 0.0
  %1195 = vmatprep.subr.mxu0 0.0
  %1196 = vmatpush1.msra.mxu0 0.0
  %1197 = vmatprep.subr.mxu0 0.0
  %1198 = vmatpush1.msra.mxu0 0.0
  %1199 = vmatprep.subr.mxu0 0.0
  %1200 = vmatpush1.msra.mxu0 0.0
  %1201 = vmatprep.subr.mxu0 0.0
  %1202 = vmatpush1.msra.mxu0 0.0
  %1203 = vmatprep.subr.mxu0 0.0
  %1204 = vmatpush1.msra.mxu0 0.0
  %1205 = vmatprep.subr.mxu0 0.0
  %1206 = vmatpush1.msra.mxu0 0.0
  %1207 = vmatprep.subr.mxu0 0.0
  %1208 = vmatpush1.msra.mxu0 0.0
  %1209 = vmatprep.subr.mxu0 0.0
  %1210 = vmatpush1.msra.mxu0 0.0
  %1211 = vmatprep.subr.mxu0 0.0
  %1212 = vmatpush1.msra.mxu0 0.0
  %1213 = vmatprep.subr.mxu0 0.0
  %1214 = vmatpush1.msra.mxu0 0.0
  %1215 = vmatprep.subr.mxu0 0.0
  %1216 = vmatpush1.msra.mxu0 0.0
  %1217 = vmatprep.subr.mxu0 0.0
  %1218 = vmatpush1.msra.mxu0 0.0
  %1219 = vmatprep.subr.mxu0 0.0
  %1220 = vmatpush1.msra.mxu0 0.0
  %1221 = vmatprep.subr.mxu0 0.0
  %1222 = vmatpush1.msra.mxu0 0.0
  %1223 = vmatprep.subr.mxu0 0.0
  %1224 = vmatpush1.msra.mxu0 0.0
  %1225 = vmatprep.subr.mxu0 0.0
  %1226 = vmatpush1.msra.mxu0 0.0
  %1227 = vmatprep.subr.mxu0 0.0
  %1228 = vmatpush1.msra.mxu0 0.0
  %1229 = vmatprep.subr.mxu0 0.0
  %1230 = vmatpush1.msra.mxu0 0.0
  %1231 = vmatprep.subr.mxu0 0.0
  %1232 = vmatpush1.msra.mxu0 0.0
  %1233 = vmatprep.subr.mxu0 0.0
  %1234 = vmatpush1.msra.mxu0 0.0
  %1235 = vmatprep.subr.mxu0 0.0
  %1236 = vmatpush1.msra.mxu0 0.0
  %1237 = vmatprep.mubr.f32.mxu0 0.0
  %1238 = vmatmul.mubr.f32.gmra.mrb[0].mxu0 %v1171
  %v1239 = vpop.f32.mrb[0].mxu0
  %v1240 = vadd.f32 0.0, %v1239
  %v1241 = vpop.f32.mrb[0].mxu0
  %1242 = vdwg.mxu0
  %v1243 = vadd.f32 %v1148, %v1240
  %v1244 = vxor.u32 %v1243, 2147483648
  %v1245 = vmul.f32 %v1244, 1.442695
  %v1246 = vpow.pop %v1245
  %v1247 = vadd.f32 %v1246, 1.0
  %v1248 = vrcp.pop %v1247
  %v1249 = vmul.f32 1.0, %v1248
  %v1250 = vtanh.pop %v1243
  %v1251 = vmul.f32 %v1249, 0.0
  %1253 = vrot.lane.b32.xlu0 %v1250, 64
  %v1254 = vpop.permute.xlu0 %1253
  %v1256 = vmul.f32 %v1249, %v1254
  %1258 = vrot.lane.b32.xlu0 %v1256, 32
  %v1259 = vpop.permute.xlu0 %1258
  %v1261 = vadd.f32 %v1251, %v1259
  %v1262 = vtanh.pop %v1261
  %1264 = vrot.lane.b32.xlu0 %v1262, 64
  %v1265 = vpop.permute.xlu0 %1264
  %v1267 = vmul.f32 %v1249, %v1265
  %1269 = vrot.lane.b32.xlu0 %v1267, 32
  %v1270 = vpop.permute.xlu0 %1269
  %v1271 = vsel %vm1068, %v1270, 0
  %1273 = vmatprep.subr.mxu0 0.0
  %1274 = vmatpush1.msra.mxu0 %v1166
  %1275 = vmatprep.subr.mxu0 0.0
  %1276 = vmatpush1.msra.mxu0 %v1167
  %1277 = vmatprep.subr.mxu0 0.0
  %1278 = vmatpush1.msra.mxu0 %v1168
  %1279 = vmatprep.subr.mxu0 0.0
  %1280 = vmatpush1.msra.mxu0 %v1169
  %1281 = vmatprep.subr.mxu0 0.0
  %1282 = vmatpush1.msra.mxu0 0.0
  %1283 = vmatprep.subr.mxu0 0.0
  %1284 = vmatpush1.msra.mxu0 0.0
  %1285 = vmatprep.subr.mxu0 0.0
  %1286 = vmatpush1.msra.mxu0 0.0
  %1287 = vmatprep.subr.mxu0 0.0
  %1288 = vmatpush1.msra.mxu0 0.0
  %1289 = vmatprep.subr.mxu0 0.0
  %1290 = vmatpush1.msra.mxu0 0.0
  %1291 = vmatprep.subr.mxu0 0.0
  %1292 = vmatpush1.msra.mxu0 0.0
  %1293 = vmatprep.subr.mxu0 0.0
  %1294 = vmatpush1.msra.mxu0 0.0
  %1295 = vmatprep.subr.mxu0 0.0
  %1296 = vmatpush1.msra.mxu0 0.0
  %1297 = vmatprep.subr.mxu0 0.0
  %1298 = vmatpush1.msra.mxu0 0.0
  %1299 = vmatprep.subr.mxu0 0.0
  %1300 = vmatpush1.msra.mxu0 0.0
  %1301 = vmatprep.subr.mxu0 0.0
  %1302 = vmatpush1.msra.mxu0 0.0
  %1303 = vmatprep.subr.mxu0 0.0
  %1304 = vmatpush1.msra.mxu0 0.0
  %1305 = vmatprep.subr.mxu0 0.0
  %1306 = vmatpush1.msra.mxu0 0.0
  %1307 = vmatprep.subr.mxu0 0.0
  %1308 = vmatpush1.msra.mxu0 0.0
  %1309 = vmatprep.subr.mxu0 0.0
  %1310 = vmatpush1.msra.mxu0 0.0
  %1311 = vmatprep.subr.mxu0 0.0
  %1312 = vmatpush1.msra.mxu0 0.0
  %1313 = vmatprep.subr.mxu0 0.0
  %1314 = vmatpush1.msra.mxu0 0.0
  %1315 = vmatprep.subr.mxu0 0.0
  %1316 = vmatpush1.msra.mxu0 0.0
  %1317 = vmatprep.subr.mxu0 0.0
  %1318 = vmatpush1.msra.mxu0 0.0
  %1319 = vmatprep.subr.mxu0 0.0
  %1320 = vmatpush1.msra.mxu0 0.0
  %1321 = vmatprep.subr.mxu0 0.0
  %1322 = vmatpush1.msra.mxu0 0.0
  %1323 = vmatprep.subr.mxu0 0.0
  %1324 = vmatpush1.msra.mxu0 0.0
  %1325 = vmatprep.subr.mxu0 0.0
  %1326 = vmatpush1.msra.mxu0 0.0
  %1327 = vmatprep.subr.mxu0 0.0
  %1328 = vmatpush1.msra.mxu0 0.0
  %1329 = vmatprep.subr.mxu0 0.0
  %1330 = vmatpush1.msra.mxu0 0.0
  %1331 = vmatprep.subr.mxu0 0.0
  %1332 = vmatpush1.msra.mxu0 0.0
  %1333 = vmatprep.subr.mxu0 0.0
  %1334 = vmatpush1.msra.mxu0 0.0
  %1335 = vmatprep.subr.mxu0 0.0
  %1336 = vmatpush1.msra.mxu0 0.0
  %1337 = vmatprep.mubr.f32.mxu0 0.0
  %1338 = vmatmul.mubr.f32.gmra.mrb[0].mxu0 %v1271
  %v1339 = vpop.f32.mrb[0].mxu0
  %v1340 = vadd.f32 0.0, %v1339
  %v1341 = vpop.f32.mrb[0].mxu0
  %1342 = vdwg.mxu0
  %v1343 = vadd.f32 %v1153, %v1340
  %v1344 = vxor.u32 %v1343, 2147483648
  %v1345 = vmul.f32 %v1344, 1.442695
  %v1346 = vpow.pop %v1345
  %v1347 = vadd.f32 %v1346, 1.0
  %v1348 = vrcp.pop %v1347
  %v1349 = vmul.f32 1.0, %v1348
  %v1350 = vtanh.pop %v1343
  %v1351 = vmul.f32 %v1349, %v1261
  %1353 = vrot.lane.b32.xlu0 %v1350, 64
  %v1354 = vpop.permute.xlu0 %1353
  %v1356 = vmul.f32 %v1349, %v1354
  %1358 = vrot.lane.b32.xlu0 %v1356, 32
  %v1359 = vpop.permute.xlu0 %1358
  %v1361 = vadd.f32 %v1351, %v1359
  %v1362 = vtanh.pop %v1361
  %1364 = vrot.lane.b32.xlu0 %v1362, 64
  %v1365 = vpop.permute.xlu0 %1364
  %v1367 = vmul.f32 %v1349, %v1365
  %1369 = vrot.lane.b32.xlu0 %v1367, 32
  %v1370 = vpop.permute.xlu0 %1369
  %v1371 = vsel %vm1068, %v1370, 0
  %1373 = vmatprep.subr.mxu0 0.0
  %1374 = vmatpush1.msra.mxu0 %v1166
  %1375 = vmatprep.subr.mxu0 0.0
  %1376 = vmatpush1.msra.mxu0 %v1167
  %1377 = vmatprep.subr.mxu0 0.0
  %1378 = vmatpush1.msra.mxu0 %v1168
  %1379 = vmatprep.subr.mxu0 0.0
  %1380 = vmatpush1.msra.mxu0 %v1169
  %1381 = vmatprep.subr.mxu0 0.0
  %1382 = vmatpush1.msra.mxu0 0.0
  %1383 = vmatprep.subr.mxu0 0.0
  %1384 = vmatpush1.msra.mxu0 0.0
  %1385 = vmatprep.subr.mxu0 0.0
  %1386 = vmatpush1.msra.mxu0 0.0
  %1387 = vmatprep.subr.mxu0 0.0
  %1388 = vmatpush1.msra.mxu0 0.0
  %1389 = vmatprep.subr.mxu0 0.0
  %1390 = vmatpush1.msra.mxu0 0.0
  %1391 = vmatprep.subr.mxu0 0.0
  %1392 = vmatpush1.msra.mxu0 0.0
  %1393 = vmatprep.subr.mxu0 0.0
  %1394 = vmatpush1.msra.mxu0 0.0
  %1395 = vmatprep.subr.mxu0 0.0
  %1396 = vmatpush1.msra.mxu0 0.0
  %1397 = vmatprep.subr.mxu0 0.0
  %1398 = vmatpush1.msra.mxu0 0.0
  %1399 = vmatprep.subr.mxu0 0.0
  %1400 = vmatpush1.msra.mxu0 0.0
  %1401 = vmatprep.subr.mxu0 0.0
  %1402 = vmatpush1.msra.mxu0 0.0
  %1403 = vmatprep.subr.mxu0 0.0
  %1404 = vmatpush1.msra.mxu0 0.0
  %1405 = vmatprep.subr.mxu0 0.0
  %1406 = vmatpush1.msra.mxu0 0.0
  %1407 = vmatprep.subr.mxu0 0.0
  %1408 = vmatpush1.msra.mxu0 0.0
  %1409 = vmatprep.subr.mxu0 0.0
  %1410 = vmatpush1.msra.mxu0 0.0
  %1411 = vmatprep.subr.mxu0 0.0
  %1412 = vmatpush1.msra.mxu0 0.0
  %1413 = vmatprep.subr.mxu0 0.0
  %1414 = vmatpush1.msra.mxu0 0.0
  %1415 = vmatprep.subr.mxu0 0.0
  %1416 = vmatpush1.msra.mxu0 0.0
  %1417 = vmatprep.subr.mxu0 0.0
  %1418 = vmatpush1.msra.mxu0 0.0
  %1419 = vmatprep.subr.mxu0 0.0
  %1420 = vmatpush1.msra.mxu0 0.0
  %1421 = vmatprep.subr.mxu0 0.0
  %1422 = vmatpush1.msra.mxu0 0.0
  %1423 = vmatprep.subr.mxu0 0.0
  %1424 = vmatpush1.msra.mxu0 0.0
  %1425 = vmatprep.subr.mxu0 0.0
  %1426 = vmatpush1.msra.mxu0 0.0
  %1427 = vmatprep.subr.mxu0 0.0
  %1428 = vmatpush1.msra.mxu0 0.0
  %1429 = vmatprep.subr.mxu0 0.0
  %1430 = vmatpush1.msra.mxu0 0.0
  %1431 = vmatprep.subr.mxu0 0.0
  %1432 = vmatpush1.msra.mxu0 0.0
  %1433 = vmatprep.subr.mxu0 0.0
  %1434 = vmatpush1.msra.mxu0 0.0
  %1435 = vmatprep.subr.mxu0 0.0
  %1436 = vmatpush1.msra.mxu0 0.0
  %1437 = vmatprep.mubr.f32.mxu0 0.0
  %1438 = vmatmul.mubr.f32.gmra.mrb[0].mxu0 %v1371
  %v1439 = vpop.f32.mrb[0].mxu0
  %v1440 = vadd.f32 0.0, %v1439
  %v1441 = vpop.f32.mrb[0].mxu0
  %1442 = vdwg.mxu0
  %v1443 = vadd.f32 %v1158, %v1440
  %v1444 = vxor.u32 %v1443, 2147483648
  %v1445 = vmul.f32 %v1444, 1.442695
  %v1446 = vpow.pop %v1445
  %v1447 = vadd.f32 %v1446, 1.0
  %v1448 = vrcp.pop %v1447
  %v1449 = vmul.f32 1.0, %v1448
  %v1450 = vtanh.pop %v1443
  %v1451 = vmul.f32 %v1449, %v1361
  %1453 = vrot.lane.b32.xlu0 %v1450, 64
  %v1454 = vpop.permute.xlu0 %1453
  %v1456 = vmul.f32 %v1449, %v1454
  %1458 = vrot.lane.b32.xlu0 %v1456, 32
  %v1459 = vpop.permute.xlu0 %1458
  %v1461 = vadd.f32 %v1451, %v1459
  %v1462 = vtanh.pop %v1461
  %1464 = vrot.lane.b32.xlu0 %v1462, 64
  %v1465 = vpop.permute.xlu0 %1464
  %v1467 = vmul.f32 %v1449, %v1465
  %1469 = vrot.lane.b32.xlu0 %v1467, 32
  %v1470 = vpop.permute.xlu0 %1469
  %v1471 = vsel %vm1068, %v1470, 0
  %1473 = vmatprep.subr.mxu0 0.0
  %1474 = vmatpush1.msra.mxu0 %v1166
  %1475 = vmatprep.subr.mxu0 0.0
  %1476 = vmatpush1.msra.mxu0 %v1167
  %1477 = vmatprep.subr.mxu0 0.0
  %1478 = vmatpush1.msra.mxu0 %v1168
  %1479 = vmatprep.subr.mxu0 0.0
  %1480 = vmatpush1.msra.mxu0 %v1169
  %1481 = vmatprep.subr.mxu0 0.0
  %1482 = vmatpush1.msra.mxu0 0.0
  %1483 = vmatprep.subr.mxu0 0.0
  %1484 = vmatpush1.msra.mxu0 0.0
  %1485 = vmatprep.subr.mxu0 0.0
  %1486 = vmatpush1.msra.mxu0 0.0
  %1487 = vmatprep.subr.mxu0 0.0
  %1488 = vmatpush1.msra.mxu0 0.0
  %1489 = vmatprep.subr.mxu0 0.0
  %1490 = vmatpush1.msra.mxu0 0.0
  %1491 = vmatprep.subr.mxu0 0.0
  %1492 = vmatpush1.msra.mxu0 0.0
  %1493 = vmatprep.subr.mxu0 0.0
  %1494 = vmatpush1.msra.mxu0 0.0
  %1495 = vmatprep.subr.mxu0 0.0
  %1496 = vmatpush1.msra.mxu0 0.0
  %1497 = vmatprep.subr.mxu0 0.0
  %1498 = vmatpush1.msra.mxu0 0.0
  %1499 = vmatprep.subr.mxu0 0.0
  %1500 = vmatpush1.msra.mxu0 0.0
  %1501 = vmatprep.subr.mxu0 0.0
  %1502 = vmatpush1.msra.mxu0 0.0
  %1503 = vmatprep.subr.mxu0 0.0
  %1504 = vmatpush1.msra.mxu0 0.0
  %1505 = vmatprep.subr.mxu0 0.0
  %1506 = vmatpush1.msra.mxu0 0.0
  %1507 = vmatprep.subr.mxu0 0.0
  %1508 = vmatpush1.msra.mxu0 0.0
  %1509 = vmatprep.subr.mxu0 0.0
  %1510 = vmatpush1.msra.mxu0 0.0
  %1511 = vmatprep.subr.mxu0 0.0
  %1512 = vmatpush1.msra.mxu0 0.0
  %1513 = vmatprep.subr.mxu0 0.0
  %1514 = vmatpush1.msra.mxu0 0.0
  %1515 = vmatprep.subr.mxu0 0.0
  %1516 = vmatpush1.msra.mxu0 0.0
  %1517 = vmatprep.subr.mxu0 0.0
  %1518 = vmatpush1.msra.mxu0 0.0
  %1519 = vmatprep.subr.mxu0 0.0
  %1520 = vmatpush1.msra.mxu0 0.0
  %1521 = vmatprep.subr.mxu0 0.0
  %1522 = vmatpush1.msra.mxu0 0.0
  %1523 = vmatprep.subr.mxu0 0.0
  %1524 = vmatpush1.msra.mxu0 0.0
  %1525 = vmatprep.subr.mxu0 0.0
  %1526 = vmatpush1.msra.mxu0 0.0
  %1527 = vmatprep.subr.mxu0 0.0
  %1528 = vmatpush1.msra.mxu0 0.0
  %1529 = vmatprep.subr.mxu0 0.0
  %1530 = vmatpush1.msra.mxu0 0.0
  %1531 = vmatprep.subr.mxu0 0.0
  %1532 = vmatpush1.msra.mxu0 0.0
  %1533 = vmatprep.subr.mxu0 0.0
  %1534 = vmatpush1.msra.mxu0 0.0
  %1535 = vmatprep.subr.mxu0 0.0
  %1536 = vmatpush1.msra.mxu0 0.0
  %1537 = vmatprep.mubr.f32.mxu0 0.0
  %1538 = vmatmul.mubr.f32.gmra.mrb[0].mxu0 %v1471
  %v1539 = vpop.f32.mrb[0].mxu0
  %v1540 = vadd.f32 0.0, %v1539
  %v1541 = vpop.f32.mrb[0].mxu0
  %1542 = vdwg.mxu0
  %v1543 = vadd.f32 %v1163, %v1540
  %v1544 = vxor.u32 %v1543, 2147483648
  %v1545 = vmul.f32 %v1544, 1.442695
  %v1546 = vpow.pop %v1545
  %v1547 = vadd.f32 %v1546, 1.0
  %v1548 = vrcp.pop %v1547
  %v1549 = vmul.f32 1.0, %v1548
  %v1550 = vtanh.pop %v1543
  %v1551 = vmul.f32 %v1549, %v1461
  %1553 = vrot.lane.b32.xlu0 %v1550, 64
  %v1554 = vpop.permute.xlu0 %1553
  %v1556 = vmul.f32 %v1549, %v1554
  %1558 = vrot.lane.b32.xlu0 %v1556, 32
  %v1559 = vpop.permute.xlu0 %1558
  %v1561 = vadd.f32 %v1551, %v1559
  %v1562 = vtanh.pop %v1561
  %1564 = vrot.lane.b32.xlu0 %v1562, 64
  %v1565 = vpop.permute.xlu0 %1564
  %v1567 = vmul.f32 %v1549, %v1565
  %v1568 = vld [vmem:[%s9] sm:$0xff]
  %v1569 = vld [vmem:[%s9 + $0x8] sm:$0xff]
  %v1570 = vld [vmem:[%s9 + $0x10] sm:$0xff]
  %v1571 = vld [vmem:[%s9 + $0x18] sm:$0xff]
  %v1572 = vld [vmem:[%s10] sm:$0x1]
  %v1574 = vlaneseq
  %v1575 = vshrl.u32 %v1574, 7
  %v1576 = vsub.s32 0, %v1575
  %v1577 = vrot.slane %v1572, %v1576
  %1580 = vrot.lane.b32.xlu0 %v1567, 32
  %v1581 = vpop.permute.xlu0 %1580
  %v1582 = vsel %vm1068, %v1581, 0
  %1584 = vmatprep.subr.mxu0 0.0
  %1585 = vmatpush1.msra.mxu0 %v1568
  %1586 = vmatprep.subr.mxu0 0.0
  %1587 = vmatpush1.msra.mxu0 %v1569
  %1588 = vmatprep.subr.mxu0 0.0
  %1589 = vmatpush1.msra.mxu0 %v1570
  %1590 = vmatprep.subr.mxu0 0.0
  %1591 = vmatpush1.msra.mxu0 %v1571
  %1592 = vmatprep.subr.mxu0 0.0
  %1593 = vmatpush1.msra.mxu0 0.0
  %1594 = vmatprep.subr.mxu0 0.0
  %1595 = vmatpush1.msra.mxu0 0.0
  %1596 = vmatprep.subr.mxu0 0.0
  %1597 = vmatpush1.msra.mxu0 0.0
  %1598 = vmatprep.subr.mxu0 0.0
  %1599 = vmatpush1.msra.mxu0 0.0
  %1600 = vmatprep.subr.mxu0 0.0
  %1601 = vmatpush1.msra.mxu0 0.0
  %1602 = vmatprep.subr.mxu0 0.0
  %1603 = vmatpush1.msra.mxu0 0.0
  %1604 = vmatprep.subr.mxu0 0.0
  %1605 = vmatpush1.msra.mxu0 0.0
  %1606 = vmatprep.subr.mxu0 0.0
  %1607 = vmatpush1.msra.mxu0 0.0
  %1608 = vmatprep.subr.mxu0 0.0
  %1609 = vmatpush1.msra.mxu0 0.0
  %1610 = vmatprep.subr.mxu0 0.0
  %1611 = vmatpush1.msra.mxu0 0.0
  %1612 = vmatprep.subr.mxu0 0.0
  %1613 = vmatpush1.msra.mxu0 0.0
  %1614 = vmatprep.subr.mxu0 0.0
  %1615 = vmatpush1.msra.mxu0 0.0
  %1616 = vmatprep.subr.mxu0 0.0
  %1617 = vmatpush1.msra.mxu0 0.0
  %1618 = vmatprep.subr.mxu0 0.0
  %1619 = vmatpush1.msra.mxu0 0.0
  %1620 = vmatprep.subr.mxu0 0.0
  %1621 = vmatpush1.msra.mxu0 0.0
  %1622 = vmatprep.subr.mxu0 0.0
  %1623 = vmatpush1.msra.mxu0 0.0
  %1624 = vmatprep.subr.mxu0 0.0
  %1625 = vmatpush1.msra.mxu0 0.0
  %1626 = vmatprep.subr.mxu0 0.0
  %1627 = vmatpush1.msra.mxu0 0.0
  %1628 = vmatprep.subr.mxu0 0.0
  %1629 = vmatpush1.msra.mxu0 0.0
  %1630 = vmatprep.subr.mxu0 0.0
  %1631 = vmatpush1.msra.mxu0 0.0
  %1632 = vmatprep.subr.mxu0 0.0
  %1633 = vmatpush1.msra.mxu0 0.0
  %1634 = vmatprep.subr.mxu0 0.0
  %1635 = vmatpush1.msra.mxu0 0.0
  %1636 = vmatprep.subr.mxu0 0.0
  %1637 = vmatpush1.msra.mxu0 0.0
  %1638 = vmatprep.subr.mxu0 0.0
  %1639 = vmatpush1.msra.mxu0 0.0
  %1640 = vmatprep.subr.mxu0 0.0
  %1641 = vmatpush1.msra.mxu0 0.0
  %1642 = vmatprep.subr.mxu0 0.0
  %1643 = vmatpush1.msra.mxu0 0.0
  %1644 = vmatprep.subr.mxu0 0.0
  %1645 = vmatpush1.msra.mxu0 0.0
  %1646 = vmatprep.subr.mxu0 0.0
  %1647 = vmatpush1.msra.mxu0 0.0
  %1648 = vmatprep.mubr.f32.mxu0 0.0
  %1649 = vmatmul.mubr.f32.gmra.mrb[0].mxu0 %v1271
  %v1650 = vpop.f32.mrb[0].mxu0
  %v1651 = vadd.f32 %v1577, %v1650
  %v1652 = vpop.f32.mrb[0].mxu0
  %1653 = vmatprep.mubr.f32.mxu0 0.0
  %1654 = vmatmul.mubr.f32.gmra.mrb[0].mxu0 %v1371
  %v1655 = vpop.f32.mrb[0].mxu0
  %v1656 = vadd.f32 %v1577, %v1655
  %v1657 = vpop.f32.mrb[0].mxu0
  %1658 = vmatprep.mubr.f32.mxu0 0.0
  %1659 = vmatmul.mubr.f32.gmra.mrb[0].mxu0 %v1471
  %v1660 = vpop.f32.mrb[0].mxu0
  %v1661 = vadd.f32 %v1577, %v1660
  %v1662 = vpop.f32.mrb[0].mxu0
  %1663 = vmatprep.mubr.f32.mxu0 0.0
  %1664 = vmatmul.mubr.f32.gmra.mrb[0].mxu0 %v1582
  %v1665 = vpop.f32.mrb[0].mxu0
  %v1666 = vadd.f32 %v1577, %v1665
  %v1667 = vpop.f32.mrb[0].mxu0
  %1668 = vdwg.mxu0
  %vm1669 = vcmask 302336
  %v1670 = vsel %vm1669, %v1651, -inf
  %1671 = vmax.xlane.f32.xlu0 %v1670
  %v1672 = vpop.xlane.xlu0 %1671
  %v1673 = vsel %vm1669, %v1656, -inf
  %1674 = vmax.xlane.f32.xlu0 %v1673
  %v1675 = vpop.xlane.xlu0 %1674
  %v1676 = vsel %vm1669, %v1661, -inf
  %1677 = vmax.xlane.f32.xlu0 %v1676
  %v1678 = vpop.xlane.xlu0 %1677
  %v1679 = vsel %vm1669, %v1666, -inf
  %1680 = vmax.xlane.f32.xlu0 %v1679
  %v1681 = vpop.xlane.xlu0 %1680
  %v1682 = vsub.f32 %v1651, %v1672
  %v1683 = vsub.f32 %v1656, %v1675
  %v1684 = vsub.f32 %v1661, %v1678
  %v1685 = vsub.f32 %v1666, %v1681
  %v1686 = vmul.f32 %v1682, 1.442695
  %v1687 = vpow.pop %v1686
  %v1688 = vmul.f32 %v1683, 1.442695
  %v1689 = vpow.pop %v1688
  %v1690 = vmul.f32 %v1684, 1.442695
  %v1691 = vpow.pop %v1690
  %v1692 = vmul.f32 %v1685, 1.442695
  %v1693 = vpow.pop %v1692
  %1698 = vrot.lane.b32.xlu0 %v1687, 96
  %v1699 = vpop.permute.xlu0 %1698
  %1700 = vrot.lane.b32.xlu0 %v1689, 96
  %v1701 = vpop.permute.xlu0 %1700
  %1702 = vrot.lane.b32.xlu0 %v1691, 96
  %v1703 = vpop.permute.xlu0 %1702
  %1704 = vrot.lane.b32.xlu0 %v1693, 96
  %v1705 = vpop.permute.xlu0 %1704
  %vm1710 = vcmask 39936
  %v1711 = vsel %vm1710, %v1699, 0.0
  %1712 = vadd.xlane.f32.xlu0 %v1711
  %v1713 = vpop.xlane.xlu0 %1712
  %v1714 = vsel %vm1710, %v1701, 0.0
  %1715 = vadd.xlane.f32.xlu0 %v1714
  %v1716 = vpop.xlane.xlu0 %1715
  %v1717 = vsel %vm1710, %v1703, 0.0
  %1718 = vadd.xlane.f32.xlu0 %v1717
  %v1719 = vpop.xlane.xlu0 %1718
  %v1720 = vsel %vm1710, %v1705, 0.0
  %1721 = vadd.xlane.f32.xlu0 %v1720
  %v1722 = vpop.xlane.xlu0 %1721
  %v1723 = vlog2.pop %v1713
  %v1724 = vmul.f32 %v1723, 0.6931472
  %v1725 = vlog2.pop %v1716
  %v1726 = vmul.f32 %v1725, 0.6931472
  %v1727 = vlog2.pop %v1719
  %v1728 = vmul.f32 %v1727, 0.6931472
  %v1729 = vlog2.pop %v1722
  %v1730 = vmul.f32 %v1729, 0.6931472
  %v1731 = vadd.f32 %v1672, %v1724
  %v1732 = vadd.f32 %v1675, %v1726
  %v1733 = vadd.f32 %v1678, %v1728
  %v1734 = vadd.f32 %v1681, %v1730
  %v1735 = vsub.f32 %v1651, %v1731
  %v1736 = vsub.f32 %v1656, %v1732
  %v1737 = vsub.f32 %v1661, %v1733
  %v1738 = vsub.f32 %v1666, %v1734
  %vm1739 = vcmask 384336
  %v1740 = vsel %vm1739, %v1651, -inf
  %1741 = vmax.xlane.f32.xlu0 %v1740
  %v1742 = vpop.xlane.xlu0 %1741
  %v1743 = vsel %vm1739, %v1656, -inf
  %1744 = vmax.xlane.f32.xlu0 %v1743
  %v1745 = vpop.xlane.xlu0 %1744
  %v1746 = vsel %vm1739, %v1661, -inf
  %1747 = vmax.xlane.f32.xlu0 %v1746
  %v1748 = vpop.xlane.xlu0 %1747
  %v1749 = vsel %vm1739, %v1666, -inf
  %1750 = vmax.xlane.f32.xlu0 %v1749
  %v1751 = vpop.xlane.xlu0 %1750
  %v1752 = vsub.f32 %v1651, %v1742
  %v1753 = vsub.f32 %v1656, %v1745
  %v1754 = vsub.f32 %v1661, %v1748
  %v1755 = vsub.f32 %v1666, %v1751
  %v1756 = vmul.f32 %v1752, 1.442695
  %v1757 = vpow.pop %v1756
  %v1758 = vmul.f32 %v1753, 1.442695
  %v1759 = vpow.pop %v1758
  %v1760 = vmul.f32 %v1754, 1.442695
  %v1761 = vpow.pop %v1760
  %v1762 = vmul.f32 %v1755, 1.442695
  %v1763 = vpow.pop %v1762
  %1768 = vrot.lane.b32.xlu0 %v1757, 86
  %v1769 = vpop.permute.xlu0 %1768
  %1770 = vrot.lane.b32.xlu0 %v1759, 86
  %v1771 = vpop.permute.xlu0 %1770
  %1772 = vrot.lane.b32.xlu0 %v1761, 86
  %v1773 = vpop.permute.xlu0 %1772
  %1774 = vrot.lane.b32.xlu0 %v1763, 86
  %v1775 = vpop.permute.xlu0 %1774
  %v1780 = vsel %vm1710, %v1769, 0.0
  %1781 = vadd.xlane.f32.xlu0 %v1780
  %v1782 = vpop.xlane.xlu0 %1781
  %v1783 = vsel %vm1710, %v1771, 0.0
  %1784 = vadd.xlane.f32.xlu0 %v1783
  %v1785 = vpop.xlane.xlu0 %1784
  %v1786 = vsel %vm1710, %v1773, 0.0
  %1787 = vadd.xlane.f32.xlu0 %v1786
  %v1788 = vpop.xlane.xlu0 %1787
  %v1789 = vsel %vm1710, %v1775, 0.0
  %1790 = vadd.xlane.f32.xlu0 %v1789
  %v1791 = vpop.xlane.xlu0 %1790
  %v1792 = vlog2.pop %v1782
  %v1793 = vmul.f32 %v1792, 0.6931472
  %v1794 = vlog2.pop %v1785
  %v1795 = vmul.f32 %v1794, 0.6931472
  %v1796 = vlog2.pop %v1788
  %v1797 = vmul.f32 %v1796, 0.6931472
  %v1798 = vlog2.pop %v1791
  %v1799 = vmul.f32 %v1798, 0.6931472
  %v1800 = vadd.f32 %v1742, %v1793
  %v1801 = vadd.f32 %v1745, %v1795
  %v1802 = vadd.f32 %v1748, %v1797
  %v1803 = vadd.f32 %v1751, %v1799
  %v1804 = vsub.f32 %v1651, %v1800
  %v1805 = vsub.f32 %v1656, %v1801
  %v1806 = vsub.f32 %v1661, %v1802
  %v1807 = vsub.f32 %v1666, %v1803
  %1812 = vrot.lane.b32.xlu0 %v1735, 5
  %v1813 = vpop.permute.xlu0 %1812
  %1814 = vrot.lane.b32.xlu0 %v1736, 5
  %v1815 = vpop.permute.xlu0 %1814
  %1816 = vrot.lane.b32.xlu0 %v1737, 5
  %v1817 = vpop.permute.xlu0 %1816
  %1818 = vrot.lane.b32.xlu0 %v1738, 5
  %v1819 = vpop.permute.xlu0 %1818
  %1828 = vrot.lane.b32.xlu0 %v1804, 5
  %v1829 = vpop.permute.xlu0 %1828
  %1830 = vrot.lane.b32.xlu0 %v1805, 5
  %v1831 = vpop.permute.xlu0 %1830
  %1832 = vrot.lane.b32.xlu0 %v1806, 5
  %v1833 = vpop.permute.xlu0 %1832
  %1834 = vrot.lane.b32.xlu0 %v1807, 5
  %v1835 = vpop.permute.xlu0 %1834
  %vm1840 = vcmask 302080
  %v1841 = vsel %vm1840, %v1651, %v1813
  %v1842 = vsel %vm1840, %v1656, %v1815
  %v1843 = vsel %vm1840, %v1661, %v1817
  %v1844 = vsel %vm1840, %v1666, %v1819
  %vm1845 = vcmask 343040
  %v1846 = vsel %vm1845, %v1841, %v1651
  %v1847 = vsel %vm1845, %v1842, %v1656
  %v1848 = vsel %vm1845, %v1843, %v1661
  %v1849 = vsel %vm1845, %v1844, %v1666
  %vm1850 = vcmask 384000
  %v1851 = vsel %vm1850, %v1846, %v1829
  %v1852 = vsel %vm1850, %v1847, %v1831
  %v1853 = vsel %vm1850, %v1848, %v1833
  %v1854 = vsel %vm1850, %v1849, %v1835
  %vm1855 = vcmask 424960
  %v1856 = vsel %vm1855, %v1851, 0.0
  %v1857 = vsel %vm1855, %v1852, 0.0
  %v1858 = vsel %vm1855, %v1853, 0.0
  %v1859 = vsel %vm1855, %v1854, 0.0
  %1860 = vst [vmem:[%s11] sm:$0xff] %v1856
  %1861 = vst [vmem:[%s11 + $0x8] sm:$0xff] %v1857
  %1862 = vst [vmem:[%s11 + $0x10] sm:$0xff] %v1858
  %1863 = vst [vmem:[%s11 + $0x18] sm:$0xff] %v1859
  // Predicated region
  $region46: #{_tomnet_forward.1} parent=0 // pred_check
    _
  $region47: #{_tomnet_forward.1} parent=0 // pred_check_branch
    %1865 = sbr.rel (0) target = $region49
  $region48: #{_tomnet_forward.1} parent=0 // pred_region
    _
  $region49: #{_tomnet_forward.1} parent=0 // pred_fallthru
    _
  // Predicated region
  $region50: #{_tomnet_forward.1} parent=0 // pred_check
    _
  $region51: #{_tomnet_forward.1} parent=0 // pred_check_branch
    %1867 = sbr.rel (0) target = $region53
  $region52: #{_tomnet_forward.1} parent=0 // pred_region
    _
  $region53: #{_tomnet_forward.1} parent=0 // pred_fallthru
    _

</llo_original>
